<compile_context>
chip_gen: v5e
topology: v5e:2x2
jax: 0.10.0
libtpu: 0.0.40
codegen_flags: <defaults>
</compile_context>

<pallas_src>
import functools

import jax
import jax.numpy as jnp
from jax.experimental import pallas as pl
from jax.experimental.pallas import tpu as pltpu

LN_EPS = 1e-5  # nn.LayerNorm default


def _round_up(a, b):
    return (a + b - 1) // b * b


def _layernorm_masked(h, gamma, beta, mask, inv_c):
    """LayerNorm over the real C features of a lane-padded [rows, Cp] block.

    Padded lanes of `h` are guaranteed zero (zero-padded weights/bias + ReLU),
    so sum(h)/C is the exact mean; (h - mu) is re-masked before the variance
    sum so padded lanes don't pollute it. gamma/beta are zero on padded lanes,
    so the output stays zero there.
    """
    mu = jnp.sum(h, axis=-1, keepdims=True) * inv_c
    d = (h - mu) * mask
    var = jnp.sum(d * d, axis=-1, keepdims=True) * inv_c
    return d * jax.lax.rsqrt(var + LN_EPS) * gamma + beta


def aggregate_kernel(x_ref, y_ref, w1x_ref, w1y_ref, w2_ref, p_ref, o_ref,
                     *, inv_c):
    # Stacked parameter block: rows = [b1, g1, be1, b2, g2, be2, lane_mask, 0]
    b1 = p_ref[0:1, :]
    g1 = p_ref[1:2, :]
    be1 = p_ref[2:3, :]
    b2 = p_ref[3:4, :]
    g2 = p_ref[4:5, :]
    be2 = p_ref[5:6, :]
    mask = p_ref[6:7, :]

    # ---- Linear(2C -> C) + ReLU, concat fused as two matmuls ----
    h = jnp.dot(x_ref[...], w1x_ref[...], preferred_element_type=jnp.float32)
    h = h + jnp.dot(y_ref[...], w1y_ref[...], preferred_element_type=jnp.float32)
    h = jnp.maximum(h + b1, 0.0)
    # Dropout: identity in inference mode.
    # ---- LayerNorm ----
    h = _layernorm_masked(h, g1, be1, mask, inv_c)
    # ---- Linear(C -> C) + ReLU ----
    h = jnp.dot(h, w2_ref[...], preferred_element_type=jnp.float32)
    h = jnp.maximum(h + b2, 0.0)
    # Dropout: identity in inference mode.
    # ---- LayerNorm ----
    h = _layernorm_masked(h, g2, be2, mask, inv_c)
    o_ref[...] = h.astype(o_ref.dtype)


@functools.partial(jax.jit, static_argnames=("row_tile",))
def aggregate_module(x, y, params, *, row_tile=256):
    """x, y: [B, L, C] float32. Returns [B, L, C]. Eval-mode forward."""
    B, L, C = x.shape
    N = B * L
    Cp = _round_up(C, 128)          # lane-dense feature axis
    Np = _round_up(N, row_tile)     # pad rows to the tile; slice after

    w1, b1, g1, be1, w2, b2, g2, be2 = params  # w1: [2C, C], w2: [C, C]

    pad_f = Cp - C
    pad_r = Np - N

    x2 = jnp.pad(x.reshape(N, C), ((0, pad_r), (0, pad_f)))
    y2 = jnp.pad(y.reshape(N, C), ((0, pad_r), (0, pad_f)))

    # Split the first weight so the concat never materializes in HBM.
    w1x = jnp.pad(w1[:C], ((0, pad_f), (0, pad_f)))   # [Cp, Cp]
    w1y = jnp.pad(w1[C:], ((0, pad_f), (0, pad_f)))   # [Cp, Cp]
    w2p = jnp.pad(w2, ((0, pad_f), (0, pad_f)))       # [Cp, Cp]

    padv = lambda v: jnp.pad(v, (0, pad_f))
    lane_mask = (jnp.arange(Cp) < C).astype(x.dtype)
    pvec = jnp.stack(
        [padv(b1), padv(g1), padv(be1), padv(b2), padv(g2), padv(be2),
         lane_mask, jnp.zeros((Cp,), x.dtype)], axis=0)  # [8, Cp]

    grid = (Np // row_tile,)
    row_spec = pl.BlockSpec((row_tile, Cp), lambda i: (i, 0))
    full = lambda shp: pl.BlockSpec(shp, lambda i: (0, 0))

    kernel = functools.partial(aggregate_kernel, inv_c=1.0 / C)

    out = pl.pallas_call(
        kernel,
        out_shape=jax.ShapeDtypeStruct((Np, Cp), x.dtype),
        grid_spec=pltpu.PrefetchScalarGridSpec(
            num_scalar_prefetch=0,
            grid=grid,
            in_specs=[
                row_spec,            # x tile  [row_tile, Cp]
                row_spec,            # y tile  [row_tile, Cp]
                full((Cp, Cp)),      # w1x
                full((Cp, Cp)),      # w1y
                full((Cp, Cp)),      # w2
                full((8, Cp)),       # stacked biases / LN params / lane mask
            ],
            out_specs=row_spec,
        ),
        compiler_params=pltpu.CompilerParams(
            # Row axis is embarrassingly parallel -> shards across v7x's 2 TCs.
            dimension_semantics=("parallel",)),
    )(x2, y2, w1x, w1y, w2p, pvec)

    return out[:N, :C].reshape(B, L, C)


def init_params(key, hdim):
    """Deterministic synthetic parameters matching Aggregate_Module.__init__."""
    ks = jax.random.split(key, 4)
    # Linear(2*hdim, hdim): torch weight is [hdim, 2*hdim]; stored transposed.
    bound1 = 1.0 / jnp.sqrt(2.0 * hdim)
    w1 = jax.random.uniform(ks[0], (2 * hdim, hdim), jnp.float32, -bound1, bound1)
    b1 = jax.random.uniform(ks[1], (hdim,), jnp.float32, -bound1, bound1)
    # Linear(hdim, hdim)
    bound2 = 1.0 / jnp.sqrt(1.0 * hdim)
    w2 = jax.random.uniform(ks[2], (hdim, hdim), jnp.float32, -bound2, bound2)
    b2 = jax.random.uniform(ks[3], (hdim,), jnp.float32, -bound2, bound2)
    # LayerNorm: gamma=1, beta=0
    g1 = jnp.ones((hdim,), jnp.float32)
    be1 = jnp.zeros((hdim,), jnp.float32)
    g2 = jnp.ones((hdim,), jnp.float32)
    be2 = jnp.zeros((hdim,), jnp.float32)
    return (w1, b1, g1, be1, w2, b2, g2, be2)


def _reference(x, y, params):
    """Pure-JAX reference matching the PyTorch forward (eval mode)."""
    w1, b1, g1, be1, w2, b2, g2, be2 = params
    agg = jnp.concatenate([x, y], axis=-1)
    h = jnp.maximum(agg @ w1 + b1, 0.0)
    mu = h.mean(-1, keepdims=True)
    var = ((h - mu) ** 2).mean(-1, keepdims=True)
    h = (h - mu) / jnp.sqrt(var + LN_EPS) * g1 + be1
    h = jnp.maximum(h @ w2 + b2, 0.0)
    mu = h.mean(-1, keepdims=True)
    var = ((h - mu) ** 2).mean(-1, keepdims=True)
    h = (h - mu) / jnp.sqrt(var + LN_EPS) * g2 + be2
    return h


if __name__ == "__main__":
    B, L, C = 2, 8, 32  # small shapes consistent with [B, L, C] inputs
    key = jax.random.PRNGKey(0)
    kx, ky, kp = jax.random.split(key, 3)
    x = jax.random.normal(kx, (B, L, C), jnp.float32)
    y = jax.random.normal(ky, (B, L, C), jnp.float32)
    params = init_params(kp, C)

    out = aggregate_module(x, y, params, row_tile=256)
    out = jax.block_until_ready(out)

    ref = _reference(x, y, params)
    assert out.shape == (B, L, C)
    assert jnp.allclose(out, ref, atol=1e-4, rtol=1e-4), "mismatch vs reference"
    print("KERNEL_OK")
</pallas_src>

<mosaic_0001>
module attributes {stable_mosaic.version = 11 : i64} {
  func.func @aggregate_kernel(%arg0: i32, %arg1: memref<256x128xf32, #tpu.memory_space<vmem>>, %arg2: memref<256x128xf32, #tpu.memory_space<vmem>>, %arg3: memref<128x128xf32, #tpu.memory_space<vmem>>, %arg4: memref<128x128xf32, #tpu.memory_space<vmem>>, %arg5: memref<128x128xf32, #tpu.memory_space<vmem>>, %arg6: memref<8x128xf32, #tpu.memory_space<vmem>>, %arg7: memref<256x128xf32, #tpu.memory_space<vmem>>) attributes {dimension_semantics = [#tpu.dimension_semantics<parallel>], iteration_bounds = array<i64: 1>, scalar_prefetch = 0 : i64, scratch_operands = 0 : i64, tpu.core_type = #tpu.core_type<tc>, window_params = [{transform_indices = @transform_0, window_bounds = array<i64: 256, 128>}, {transform_indices = @transform_1, window_bounds = array<i64: 256, 128>}, {pipeline_mode = #tpu.pipeline_mode<synchronous>, transform_indices = @transform_2, window_bounds = array<i64: 128, 128>}, {pipeline_mode = #tpu.pipeline_mode<synchronous>, transform_indices = @transform_3, window_bounds = array<i64: 128, 128>}, {pipeline_mode = #tpu.pipeline_mode<synchronous>, transform_indices = @transform_4, window_bounds = array<i64: 128, 128>}, {pipeline_mode = #tpu.pipeline_mode<synchronous>, transform_indices = @transform_5, window_bounds = array<i64: 8, 128>}, {transform_indices = @transform_6, window_bounds = array<i64: 256, 128>}]} {
    %c0 = arith.constant 0 : index
    %c0_0 = arith.constant 0 : index
    %0 = vector.load %arg6[%c0, %c0_0] : memref<8x128xf32, #tpu.memory_space<vmem>>, vector<1x128xf32>
    %c1 = arith.constant 1 : index
    %c0_1 = arith.constant 0 : index
    %1 = vector.load %arg6[%c1, %c0_1] : memref<8x128xf32, #tpu.memory_space<vmem>>, vector<1x128xf32>
    %c2 = arith.constant 2 : index
    %c0_2 = arith.constant 0 : index
    %2 = vector.load %arg6[%c2, %c0_2] : memref<8x128xf32, #tpu.memory_space<vmem>>, vector<1x128xf32>
    %c3 = arith.constant 3 : index
    %c0_3 = arith.constant 0 : index
    %3 = vector.load %arg6[%c3, %c0_3] : memref<8x128xf32, #tpu.memory_space<vmem>>, vector<1x128xf32>
    %c4 = arith.constant 4 : index
    %c0_4 = arith.constant 0 : index
    %4 = vector.load %arg6[%c4, %c0_4] : memref<8x128xf32, #tpu.memory_space<vmem>>, vector<1x128xf32>
    %c5 = arith.constant 5 : index
    %c0_5 = arith.constant 0 : index
    %5 = vector.load %arg6[%c5, %c0_5] : memref<8x128xf32, #tpu.memory_space<vmem>>, vector<1x128xf32>
    %c6 = arith.constant 6 : index
    %c0_6 = arith.constant 0 : index
    %6 = vector.load %arg6[%c6, %c0_6] : memref<8x128xf32, #tpu.memory_space<vmem>>, vector<1x128xf32>
    %c0_7 = arith.constant 0 : index
    %c0_8 = arith.constant 0 : index
    %7 = vector.load %arg1[%c0_7, %c0_8] : memref<256x128xf32, #tpu.memory_space<vmem>>, vector<256x128xf32>
    %c0_9 = arith.constant 0 : index
    %c0_10 = arith.constant 0 : index
    %8 = vector.load %arg3[%c0_9, %c0_10] : memref<128x128xf32, #tpu.memory_space<vmem>>, vector<128x128xf32>
    %cst = arith.constant dense<0.000000e+00> : vector<256x128xf32>
    %9 = tpu.matmul %7, %8, %cst {dimension_numbers = #tpu.dot_dimension_numbers<[1], [0], [0], [1], [0, 0, 1, 1], [], []>} : vector<256x128xf32>, vector<128x128xf32>, vector<256x128xf32> -> vector<256x128xf32>
    %c0_11 = arith.constant 0 : index
    %c0_12 = arith.constant 0 : index
    %10 = vector.load %arg2[%c0_11, %c0_12] : memref<256x128xf32, #tpu.memory_space<vmem>>, vector<256x128xf32>
    %c0_13 = arith.constant 0 : index
    %c0_14 = arith.constant 0 : index
    %11 = vector.load %arg4[%c0_13, %c0_14] : memref<128x128xf32, #tpu.memory_space<vmem>>, vector<128x128xf32>
    %cst_15 = arith.constant dense<0.000000e+00> : vector<256x128xf32>
    %12 = tpu.matmul %10, %11, %cst_15 {dimension_numbers = #tpu.dot_dimension_numbers<[1], [0], [0], [1], [0, 0, 1, 1], [], []>} : vector<256x128xf32>, vector<128x128xf32>, vector<256x128xf32> -> vector<256x128xf32>
    %13 = arith.addf %9, %12 : vector<256x128xf32>
    %14 = vector.broadcast %0 : vector<1x128xf32> to vector<256x128xf32>
    %15 = arith.addf %13, %14 : vector<256x128xf32>
    %cst_16 = arith.constant 0.000000e+00 : f32
    %16 = vector.broadcast %cst_16 : f32 to vector<256x128xf32>
    %17 = arith.maximumf %15, %16 : vector<256x128xf32>
    %cst_17 = arith.constant dense<0.000000e+00> : vector<256xf32>
    %18 = vector.multi_reduction <add>, %17, %cst_17 [1] : vector<256x128xf32> to vector<256xf32>
    %19 = vector.shape_cast %18 : vector<256xf32> to vector<256x1xf32>
    %cst_18 = arith.constant 3.125000e-02 : f32
    %20 = vector.broadcast %cst_18 : f32 to vector<256x1xf32>
    %21 = arith.mulf %19, %20 : vector<256x1xf32>
    %22 = vector.broadcast %21 : vector<256x1xf32> to vector<256x128xf32>
    %23 = arith.subf %17, %22 : vector<256x128xf32>
    %24 = vector.broadcast %6 : vector<1x128xf32> to vector<256x128xf32>
    %25 = arith.mulf %23, %24 : vector<256x128xf32>
    %26 = arith.mulf %25, %25 : vector<256x128xf32>
    %cst_19 = arith.constant dense<0.000000e+00> : vector<256xf32>
    %27 = vector.multi_reduction <add>, %26, %cst_19 [1] : vector<256x128xf32> to vector<256xf32>
    %28 = vector.shape_cast %27 : vector<256xf32> to vector<256x1xf32>
    %cst_20 = arith.constant 3.125000e-02 : f32
    %29 = vector.broadcast %cst_20 : f32 to vector<256x1xf32>
    %30 = arith.mulf %28, %29 : vector<256x1xf32>
    %cst_21 = arith.constant 9.99999974E-6 : f32
    %31 = vector.broadcast %cst_21 : f32 to vector<256x1xf32>
    %32 = arith.addf %30, %31 : vector<256x1xf32>
    %33 = math.rsqrt %32 : vector<256x1xf32>
    %34 = vector.broadcast %33 : vector<256x1xf32> to vector<256x128xf32>
    %35 = arith.mulf %25, %34 : vector<256x128xf32>
    %36 = vector.broadcast %1 : vector<1x128xf32> to vector<256x128xf32>
    %37 = arith.mulf %35, %36 : vector<256x128xf32>
    %38 = vector.broadcast %2 : vector<1x128xf32> to vector<256x128xf32>
    %39 = arith.addf %37, %38 : vector<256x128xf32>
    %c0_22 = arith.constant 0 : index
    %c0_23 = arith.constant 0 : index
    %40 = vector.load %arg5[%c0_22, %c0_23] : memref<128x128xf32, #tpu.memory_space<vmem>>, vector<128x128xf32>
    %cst_24 = arith.constant dense<0.000000e+00> : vector<256x128xf32>
    %41 = tpu.matmul %39, %40, %cst_24 {dimension_numbers = #tpu.dot_dimension_numbers<[1], [0], [0], [1], [0, 0, 1, 1], [], []>} : vector<256x128xf32>, vector<128x128xf32>, vector<256x128xf32> -> vector<256x128xf32>
    %42 = vector.broadcast %3 : vector<1x128xf32> to vector<256x128xf32>
    %43 = arith.addf %41, %42 : vector<256x128xf32>
    %cst_25 = arith.constant 0.000000e+00 : f32
    %44 = vector.broadcast %cst_25 : f32 to vector<256x128xf32>
    %45 = arith.maximumf %43, %44 : vector<256x128xf32>
    %cst_26 = arith.constant dense<0.000000e+00> : vector<256xf32>
    %46 = vector.multi_reduction <add>, %45, %cst_26 [1] : vector<256x128xf32> to vector<256xf32>
    %47 = vector.shape_cast %46 : vector<256xf32> to vector<256x1xf32>
    %cst_27 = arith.constant 3.125000e-02 : f32
    %48 = vector.broadcast %cst_27 : f32 to vector<256x1xf32>
    %49 = arith.mulf %47, %48 : vector<256x1xf32>
    %50 = vector.broadcast %49 : vector<256x1xf32> to vector<256x128xf32>
    %51 = arith.subf %45, %50 : vector<256x128xf32>
    %52 = vector.broadcast %6 : vector<1x128xf32> to vector<256x128xf32>
    %53 = arith.mulf %51, %52 : vector<256x128xf32>
    %54 = arith.mulf %53, %53 : vector<256x128xf32>
    %cst_28 = arith.constant dense<0.000000e+00> : vector<256xf32>
    %55 = vector.multi_reduction <add>, %54, %cst_28 [1] : vector<256x128xf32> to vector<256xf32>
    %56 = vector.shape_cast %55 : vector<256xf32> to vector<256x1xf32>
    %cst_29 = arith.constant 3.125000e-02 : f32
    %57 = vector.broadcast %cst_29 : f32 to vector<256x1xf32>
    %58 = arith.mulf %56, %57 : vector<256x1xf32>
    %cst_30 = arith.constant 9.99999974E-6 : f32
    %59 = vector.broadcast %cst_30 : f32 to vector<256x1xf32>
    %60 = arith.addf %58, %59 : vector<256x1xf32>
    %61 = math.rsqrt %60 : vector<256x1xf32>
    %62 = vector.broadcast %61 : vector<256x1xf32> to vector<256x128xf32>
    %63 = arith.mulf %53, %62 : vector<256x128xf32>
    %64 = vector.broadcast %4 : vector<1x128xf32> to vector<256x128xf32>
    %65 = arith.mulf %63, %64 : vector<256x128xf32>
    %66 = vector.broadcast %5 : vector<1x128xf32> to vector<256x128xf32>
    %67 = arith.addf %65, %66 : vector<256x128xf32>
    %c0_31 = arith.constant 0 : index
    %c0_32 = arith.constant 0 : index
    %68 = vector.load %arg7[%c0_31, %c0_32] : memref<256x128xf32, #tpu.memory_space<vmem>>, vector<256x128xf32>
    tpu.vector_store %arg7[%c0_31, %c0_32], %67 {strides = array<i32>} : memref<256x128xf32, #tpu.memory_space<vmem>>, vector<256x128xf32>,
    return
  }
  func.func @transform_0(%arg0: i32) -> (i32, i32) {
    %c0_i32 = arith.constant 0 : i32
    %c0_i32_0 = arith.constant 0 : i32
    return %arg0, %c0_i32 : i32, i32
  }
  func.func @transform_1(%arg0: i32) -> (i32, i32) {
    %c0_i32 = arith.constant 0 : i32
    %c0_i32_0 = arith.constant 0 : i32
    return %arg0, %c0_i32 : i32, i32
  }
  func.func @transform_2(%arg0: i32) -> (i32, i32) {
    %c0_i32 = arith.constant 0 : i32
    %c0_i32_0 = arith.constant 0 : i32
    %c0_i32_1 = arith.constant 0 : i32
    return %c0_i32, %c0_i32_0 : i32, i32
  }
  func.func @transform_3(%arg0: i32) -> (i32, i32) {
    %c0_i32 = arith.constant 0 : i32
    %c0_i32_0 = arith.constant 0 : i32
    %c0_i32_1 = arith.constant 0 : i32
    return %c0_i32, %c0_i32_0 : i32, i32
  }
  func.func @transform_4(%arg0: i32) -> (i32, i32) {
    %c0_i32 = arith.constant 0 : i32
    %c0_i32_0 = arith.constant 0 : i32
    %c0_i32_1 = arith.constant 0 : i32
    return %c0_i32, %c0_i32_0 : i32, i32
  }
  func.func @transform_5(%arg0: i32) -> (i32, i32) {
    %c0_i32 = arith.constant 0 : i32
    %c0_i32_0 = arith.constant 0 : i32
    %c0_i32_1 = arith.constant 0 : i32
    return %c0_i32, %c0_i32_0 : i32, i32
  }
  func.func @transform_6(%arg0: i32) -> (i32, i32) {
    %c0_i32 = arith.constant 0 : i32
    %c0_i32_0 = arith.constant 0 : i32
    return %arg0, %c0_i32 : i32, i32
  }
}

</mosaic_0001>

<llo_original>
// kernel: aggregate_module.1
$region0: #{aggregate_module.1}
  #allocation0 [shape = 'u32[]', space=smem, size = 0x4, offset = 0x4, fixed_abs, tag = 'smem constant byte address 0x4 - core index']
  #allocation1 [shape = 'u32[72,128]{1,0:T(1,128)}', space=vmem, size = 0x9000, scoped, tag = 'internal scratch']
  %s0 = inlined_call_operand.vmem [shape: f32[256,128], index: 0, kind: input, shape index: {}]
  %s1 = inlined_call_operand.vmem [shape: f32[256,128], index: 1, kind: input, shape index: {}]
  %s2 = inlined_call_operand.vmem [shape: f32[128,128], index: 2, kind: input, shape index: {}]
  %s3 = inlined_call_operand.vmem [shape: f32[128,128], index: 3, kind: input, shape index: {}]
  %s4 = inlined_call_operand.vmem [shape: f32[128,128], index: 4, kind: input, shape index: {}]
  %s5 = inlined_call_operand.vmem [shape: f32[8,128], index: 5, kind: input, shape index: {}]
  %s6 = inlined_call_operand.vmem [shape: f32[256,128], index: 6, kind: output, shape index: {}]
  %s7 = sld [smem:[#allocation0]]
  $region34: #{aggregate_module.1} parent=0
    _
  %s9 = ssub.s32 1, %s7
  %s10 = scalar_select 0, %s9, %s7
  // Predicated region
  $region2: #{aggregate_module.1} parent=0 // pred_check
    _
  $region3: #{aggregate_module.1} parent=0 // pred_check_branch
    %12 = sbr.rel (0) target = $region5
  $region4: #{aggregate_module.1} parent=0 // pred_region
    _
  $region5: #{aggregate_module.1} parent=0 // pred_fallthru
    _
  // Predicated region
  $region6: #{aggregate_module.1} parent=0 // pred_check
    _
  $region7: #{aggregate_module.1} parent=0 // pred_check_branch
    %14 = sbr.rel (0) target = $region9
  $region8: #{aggregate_module.1} parent=0 // pred_region
    _
  $region9: #{aggregate_module.1} parent=0 // pred_fallthru
    _
  // Predicated region
  $region10: #{aggregate_module.1} parent=0 // pred_check
    _
  $region11: #{aggregate_module.1} parent=0 // pred_check_branch
    %16 = sbr.rel (0) target = $region13
  $region12: #{aggregate_module.1} parent=0 // pred_region
    _
  $region13: #{aggregate_module.1} parent=0 // pred_fallthru
    _
  // Predicated region
  $region14: #{aggregate_module.1} parent=0 // pred_check
    _
  $region15: #{aggregate_module.1} parent=0 // pred_check_branch
    %18 = sbr.rel (0) target = $region17
  $region16: #{aggregate_module.1} parent=0 // pred_region
    _
  $region17: #{aggregate_module.1} parent=0 // pred_fallthru
    _
  // Predicated region
  $region18: #{aggregate_module.1} parent=0 // pred_check
    _
  $region19: #{aggregate_module.1} parent=0 // pred_check_branch
    %20 = sbr.rel (0) target = $region21
  $region20: #{aggregate_module.1} parent=0 // pred_region
    _
  $region21: #{aggregate_module.1} parent=0 // pred_fallthru
    _
  // Predicated region
  $region22: #{aggregate_module.1} parent=0 // pred_check
    _
  $region23: #{aggregate_module.1} parent=0 // pred_check_branch
    %22 = sbr.rel (0) target = $region25
  $region24: #{aggregate_module.1} parent=0 // pred_region
    _
  $region25: #{aggregate_module.1} parent=0 // pred_fallthru
    _
  %v23 = vld [vmem:[%s5] sm:$0x1]
  %v24 = vld [vmem:[%s5 + $0x1] sm:$0x1]
  %v25 = vld [vmem:[%s5 + $0x2] sm:$0x1]
  %v26 = vld [vmem:[%s5 + $0x3] sm:$0x1]
  %v27 = vld [vmem:[%s5 + $0x4] sm:$0x1]
  %v28 = vld [vmem:[%s5 + $0x5] sm:$0x1]
  %v29 = vld [vmem:[%s5 + $0x6] sm:$0x1]
  %v30 = vld [vmem:[%s0] sm:$0xff]
  %v31 = vld [vmem:[%s0 + $0x8] sm:$0xff]
  %v32 = vld [vmem:[%s0 + $0x10] sm:$0xff]
  %v33 = vld [vmem:[%s0 + $0x18] sm:$0xff]
  %v34 = vld [vmem:[%s0 + $0x20] sm:$0xff]
  %v35 = vld [vmem:[%s0 + $0x28] sm:$0xff]
  %v36 = vld [vmem:[%s0 + $0x30] sm:$0xff]
  %v37 = vld [vmem:[%s0 + $0x38] sm:$0xff]
  %v38 = vld [vmem:[%s0 + $0x40] sm:$0xff]
  %v39 = vld [vmem:[%s0 + $0x48] sm:$0xff]
  %v40 = vld [vmem:[%s0 + $0x50] sm:$0xff]
  %v41 = vld [vmem:[%s0 + $0x58] sm:$0xff]
  %v42 = vld [vmem:[%s0 + $0x60] sm:$0xff]
  %v43 = vld [vmem:[%s0 + $0x68] sm:$0xff]
  %v44 = vld [vmem:[%s0 + $0x70] sm:$0xff]
  %v45 = vld [vmem:[%s0 + $0x78] sm:$0xff]
  %v46 = vld [vmem:[%s0 + $0x80] sm:$0xff]
  %v47 = vld [vmem:[%s0 + $0x88] sm:$0xff]
  %v48 = vld [vmem:[%s0 + $0x90] sm:$0xff]
  %v49 = vld [vmem:[%s0 + $0x98] sm:$0xff]
  %v50 = vld [vmem:[%s0 + $0xa0] sm:$0xff]
  %v51 = vld [vmem:[%s0 + $0xa8] sm:$0xff]
  %v52 = vld [vmem:[%s0 + $0xb0] sm:$0xff]
  %v53 = vld [vmem:[%s0 + $0xb8] sm:$0xff]
  %v54 = vld [vmem:[%s0 + $0xc0] sm:$0xff]
  %v55 = vld [vmem:[%s0 + $0xc8] sm:$0xff]
  %v56 = vld [vmem:[%s0 + $0xd0] sm:$0xff]
  %v57 = vld [vmem:[%s0 + $0xd8] sm:$0xff]
  %v58 = vld [vmem:[%s0 + $0xe0] sm:$0xff]
  %v59 = vld [vmem:[%s0 + $0xe8] sm:$0xff]
  %v60 = vld [vmem:[%s0 + $0xf0] sm:$0xff]
  %v61 = vld [vmem:[%s0 + $0xf8] sm:$0xff]
  %v62 = vld [vmem:[%s2] sm:$0xff]
  %v63 = vld [vmem:[%s2 + $0x8] sm:$0xff]
  %v64 = vld [vmem:[%s2 + $0x10] sm:$0xff]
  %v65 = vld [vmem:[%s2 + $0x18] sm:$0xff]
  %v66 = vld [vmem:[%s2 + $0x20] sm:$0xff]
  %v67 = vld [vmem:[%s2 + $0x28] sm:$0xff]
  %v68 = vld [vmem:[%s2 + $0x30] sm:$0xff]
  %v69 = vld [vmem:[%s2 + $0x38] sm:$0xff]
  %v70 = vld [vmem:[%s2 + $0x40] sm:$0xff]
  %v71 = vld [vmem:[%s2 + $0x48] sm:$0xff]
  %v72 = vld [vmem:[%s2 + $0x50] sm:$0xff]
  %v73 = vld [vmem:[%s2 + $0x58] sm:$0xff]
  %v74 = vld [vmem:[%s2 + $0x60] sm:$0xff]
  %v75 = vld [vmem:[%s2 + $0x68] sm:$0xff]
  %v76 = vld [vmem:[%s2 + $0x70] sm:$0xff]
  %v77 = vld [vmem:[%s2 + $0x78] sm:$0xff]
  %v78 = vld [vmem:[%s1] sm:$0xff]
  %v79 = vld [vmem:[%s1 + $0x8] sm:$0xff]
  %v80 = vld [vmem:[%s1 + $0x10] sm:$0xff]
  %v81 = vld [vmem:[%s1 + $0x18] sm:$0xff]
  %v82 = vld [vmem:[%s1 + $0x20] sm:$0xff]
  %v83 = vld [vmem:[%s1 + $0x28] sm:$0xff]
  %v84 = vld [vmem:[%s1 + $0x30] sm:$0xff]
  %v85 = vld [vmem:[%s1 + $0x38] sm:$0xff]
  %v86 = vld [vmem:[%s1 + $0x40] sm:$0xff]
  %v87 = vld [vmem:[%s1 + $0x48] sm:$0xff]
  %v88 = vld [vmem:[%s1 + $0x50] sm:$0xff]
  %v89 = vld [vmem:[%s1 + $0x58] sm:$0xff]
  %v90 = vld [vmem:[%s1 + $0x60] sm:$0xff]
  %v91 = vld [vmem:[%s1 + $0x68] sm:$0xff]
  %v92 = vld [vmem:[%s1 + $0x70] sm:$0xff]
  %v93 = vld [vmem:[%s1 + $0x78] sm:$0xff]
  %v94 = vld [vmem:[%s1 + $0x80] sm:$0xff]
  %v95 = vld [vmem:[%s1 + $0x88] sm:$0xff]
  %v96 = vld [vmem:[%s1 + $0x90] sm:$0xff]
  %v97 = vld [vmem:[%s1 + $0x98] sm:$0xff]
  %v98 = vld [vmem:[%s1 + $0xa0] sm:$0xff]
  %v99 = vld [vmem:[%s1 + $0xa8] sm:$0xff]
  %v100 = vld [vmem:[%s1 + $0xb0] sm:$0xff]
  %v101 = vld [vmem:[%s1 + $0xb8] sm:$0xff]
  %v102 = vld [vmem:[%s1 + $0xc0] sm:$0xff]
  %v103 = vld [vmem:[%s1 + $0xc8] sm:$0xff]
  %v104 = vld [vmem:[%s1 + $0xd0] sm:$0xff]
  %v105 = vld [vmem:[%s1 + $0xd8] sm:$0xff]
  %v106 = vld [vmem:[%s1 + $0xe0] sm:$0xff]
  %v107 = vld [vmem:[%s1 + $0xe8] sm:$0xff]
  %v108 = vld [vmem:[%s1 + $0xf0] sm:$0xff]
  %v109 = vld [vmem:[%s1 + $0xf8] sm:$0xff]
  %v110 = vld [vmem:[%s3] sm:$0xff]
  %v111 = vld [vmem:[%s3 + $0x8] sm:$0xff]
  %v112 = vld [vmem:[%s3 + $0x10] sm:$0xff]
  %v113 = vld [vmem:[%s3 + $0x18] sm:$0xff]
  %v114 = vld [vmem:[%s3 + $0x20] sm:$0xff]
  %v115 = vld [vmem:[%s3 + $0x28] sm:$0xff]
  %v116 = vld [vmem:[%s3 + $0x30] sm:$0xff]
  %v117 = vld [vmem:[%s3 + $0x38] sm:$0xff]
  %v118 = vld [vmem:[%s3 + $0x40] sm:$0xff]
  %v119 = vld [vmem:[%s3 + $0x48] sm:$0xff]
  %v120 = vld [vmem:[%s3 + $0x50] sm:$0xff]
  %v121 = vld [vmem:[%s3 + $0x58] sm:$0xff]
  %v122 = vld [vmem:[%s3 + $0x60] sm:$0xff]
  %v123 = vld [vmem:[%s3 + $0x68] sm:$0xff]
  %v124 = vld [vmem:[%s3 + $0x70] sm:$0xff]
  %v125 = vld [vmem:[%s3 + $0x78] sm:$0xff]
  %126 = vmatpush.msra.mxu0 %v125
  %127 = vmatpush.msra.mxu0 %v124
  %128 = vmatpush.msra.mxu0 %v123
  %129 = vmatpush.msra.mxu0 %v122
  %130 = vmatpush.msra.mxu0 %v121
  %131 = vmatpush.msra.mxu0 %v120
  %132 = vmatpush.msra.mxu0 %v119
  %133 = vmatpush.msra.mxu0 %v118
  %134 = vmatpush.msra.mxu0 %v117
  %135 = vmatpush.msra.mxu0 %v116
  %136 = vmatpush.msra.mxu0 %v115
  %137 = vmatpush.msra.mxu0 %v114
  %138 = vmatpush.msra.mxu0 %v113
  %139 = vmatpush.msra.mxu0 %v112
  %140 = vmatpush.msra.mxu0 %v111
  %141 = vmatpush.msra.mxu0 %v110
  %142 = vmatmul.f32.gmra.mxu0 %v78
  %v143 = vpop.f32.mrf.mxu0
  %v144 = vadd.f32 0.0, %v143
  %145 = vmatmul.f32.gmra.mxu0 %v79
  %v146 = vpop.f32.mrf.mxu0
  %v147 = vadd.f32 0.0, %v146
  %148 = vmatmul.f32.gmra.mxu0 %v80
  %v149 = vpop.f32.mrf.mxu0
  %v150 = vadd.f32 0.0, %v149
  %151 = vmatmul.f32.gmra.mxu0 %v81
  %v152 = vpop.f32.mrf.mxu0
  %v153 = vadd.f32 0.0, %v152
  %154 = vmatmul.f32.gmra.mxu0 %v82
  %v155 = vpop.f32.mrf.mxu0
  %v156 = vadd.f32 0.0, %v155
  %157 = vmatmul.f32.gmra.mxu0 %v83
  %v158 = vpop.f32.mrf.mxu0
  %v159 = vadd.f32 0.0, %v158
  %160 = vmatmul.f32.gmra.mxu0 %v84
  %v161 = vpop.f32.mrf.mxu0
  %v162 = vadd.f32 0.0, %v161
  %163 = vmatmul.f32.gmra.mxu0 %v85
  %v164 = vpop.f32.mrf.mxu0
  %v165 = vadd.f32 0.0, %v164
  %166 = vmatmul.f32.gmra.mxu0 %v86
  %v167 = vpop.f32.mrf.mxu0
  %v168 = vadd.f32 0.0, %v167
  %169 = vmatmul.f32.gmra.mxu0 %v87
  %v170 = vpop.f32.mrf.mxu0
  %v171 = vadd.f32 0.0, %v170
  %172 = vmatmul.f32.gmra.mxu0 %v88
  %v173 = vpop.f32.mrf.mxu0
  %v174 = vadd.f32 0.0, %v173
  %175 = vmatmul.f32.gmra.mxu0 %v89
  %v176 = vpop.f32.mrf.mxu0
  %v177 = vadd.f32 0.0, %v176
  %178 = vmatmul.f32.gmra.mxu0 %v90
  %v179 = vpop.f32.mrf.mxu0
  %v180 = vadd.f32 0.0, %v179
  %181 = vmatmul.f32.gmra.mxu0 %v91
  %v182 = vpop.f32.mrf.mxu0
  %v183 = vadd.f32 0.0, %v182
  %184 = vmatmul.f32.gmra.mxu0 %v92
  %v185 = vpop.f32.mrf.mxu0
  %v186 = vadd.f32 0.0, %v185
  %187 = vmatmul.f32.gmra.mxu0 %v93
  %v188 = vpop.f32.mrf.mxu0
  %v189 = vadd.f32 0.0, %v188
  %190 = vmatmul.f32.gmra.mxu0 %v94
  %v191 = vpop.f32.mrf.mxu0
  %v192 = vadd.f32 0.0, %v191
  %193 = vmatmul.f32.gmra.mxu0 %v95
  %v194 = vpop.f32.mrf.mxu0
  %v195 = vadd.f32 0.0, %v194
  %196 = vmatmul.f32.gmra.mxu0 %v96
  %v197 = vpop.f32.mrf.mxu0
  %v198 = vadd.f32 0.0, %v197
  %199 = vmatmul.f32.gmra.mxu0 %v97
  %v200 = vpop.f32.mrf.mxu0
  %v201 = vadd.f32 0.0, %v200
  %202 = vmatmul.f32.gmra.mxu0 %v98
  %v203 = vpop.f32.mrf.mxu0
  %v204 = vadd.f32 0.0, %v203
  %205 = vmatmul.f32.gmra.mxu0 %v99
  %v206 = vpop.f32.mrf.mxu0
  %v207 = vadd.f32 0.0, %v206
  %208 = vmatmul.f32.gmra.mxu0 %v100
  %v209 = vpop.f32.mrf.mxu0
  %v210 = vadd.f32 0.0, %v209
  %211 = vmatmul.f32.gmra.mxu0 %v101
  %v212 = vpop.f32.mrf.mxu0
  %v213 = vadd.f32 0.0, %v212
  %214 = vmatmul.f32.gmra.mxu0 %v102
  %v215 = vpop.f32.mrf.mxu0
  %v216 = vadd.f32 0.0, %v215
  %217 = vmatmul.f32.gmra.mxu0 %v103
  %v218 = vpop.f32.mrf.mxu0
  %v219 = vadd.f32 0.0, %v218
  %220 = vmatmul.f32.gmra.mxu0 %v104
  %v221 = vpop.f32.mrf.mxu0
  %v222 = vadd.f32 0.0, %v221
  %223 = vmatmul.f32.gmra.mxu0 %v105
  %v224 = vpop.f32.mrf.mxu0
  %v225 = vadd.f32 0.0, %v224
  %226 = vmatmul.f32.gmra.mxu0 %v106
  %v227 = vpop.f32.mrf.mxu0
  %v228 = vadd.f32 0.0, %v227
  %229 = vmatmul.f32.gmra.mxu0 %v107
  %v230 = vpop.f32.mrf.mxu0
  %v231 = vadd.f32 0.0, %v230
  %232 = vmatmul.f32.gmra.mxu0 %v108
  %v233 = vpop.f32.mrf.mxu0
  %v234 = vadd.f32 0.0, %v233
  %235 = vmatmul.f32.gmra.mxu0 %v109
  %v236 = vpop.f32.mrf.mxu0
  %v237 = vadd.f32 0.0, %v236
  %238 = vdwg.mxu0
  %239 = vmatpush.msra.mxu0 %v77
  %240 = vmatpush.msra.mxu0 %v76
  %241 = vmatpush.msra.mxu0 %v75
  %242 = vmatpush.msra.mxu0 %v74
  %243 = vmatpush.msra.mxu0 %v73
  %244 = vmatpush.msra.mxu0 %v72
  %245 = vmatpush.msra.mxu0 %v71
  %246 = vmatpush.msra.mxu0 %v70
  %247 = vmatpush.msra.mxu0 %v69
  %248 = vmatpush.msra.mxu0 %v68
  %249 = vmatpush.msra.mxu0 %v67
  %250 = vmatpush.msra.mxu0 %v66
  %251 = vmatpush.msra.mxu0 %v65
  %252 = vmatpush.msra.mxu0 %v64
  %253 = vmatpush.msra.mxu0 %v63
  %254 = vmatpush.msra.mxu0 %v62
  %255 = vmatmul.f32.gmra.mxu0 %v30
  %v256 = vpop.f32.mrf.mxu0
  %v257 = vadd.f32 %v144, %v256
  %258 = vmatmul.f32.gmra.mxu0 %v31
  %v259 = vpop.f32.mrf.mxu0
  %v260 = vadd.f32 %v147, %v259
  %261 = vmatmul.f32.gmra.mxu0 %v32
  %v262 = vpop.f32.mrf.mxu0
  %v263 = vadd.f32 %v150, %v262
  %264 = vmatmul.f32.gmra.mxu0 %v33
  %v265 = vpop.f32.mrf.mxu0
  %v266 = vadd.f32 %v153, %v265
  %267 = vmatmul.f32.gmra.mxu0 %v34
  %v268 = vpop.f32.mrf.mxu0
  %v269 = vadd.f32 %v156, %v268
  %270 = vmatmul.f32.gmra.mxu0 %v35
  %v271 = vpop.f32.mrf.mxu0
  %v272 = vadd.f32 %v159, %v271
  %273 = vmatmul.f32.gmra.mxu0 %v36
  %v274 = vpop.f32.mrf.mxu0
  %v275 = vadd.f32 %v162, %v274
  %276 = vmatmul.f32.gmra.mxu0 %v37
  %v277 = vpop.f32.mrf.mxu0
  %v278 = vadd.f32 %v165, %v277
  %279 = vmatmul.f32.gmra.mxu0 %v38
  %v280 = vpop.f32.mrf.mxu0
  %v281 = vadd.f32 %v168, %v280
  %282 = vmatmul.f32.gmra.mxu0 %v39
  %v283 = vpop.f32.mrf.mxu0
  %v284 = vadd.f32 %v171, %v283
  %285 = vmatmul.f32.gmra.mxu0 %v40
  %v286 = vpop.f32.mrf.mxu0
  %v287 = vadd.f32 %v174, %v286
  %288 = vmatmul.f32.gmra.mxu0 %v41
  %v289 = vpop.f32.mrf.mxu0
  %v290 = vadd.f32 %v177, %v289
  %291 = vmatmul.f32.gmra.mxu0 %v42
  %v292 = vpop.f32.mrf.mxu0
  %v293 = vadd.f32 %v180, %v292
  %294 = vmatmul.f32.gmra.mxu0 %v43
  %v295 = vpop.f32.mrf.mxu0
  %v296 = vadd.f32 %v183, %v295
  %297 = vmatmul.f32.gmra.mxu0 %v44
  %v298 = vpop.f32.mrf.mxu0
  %v299 = vadd.f32 %v186, %v298
  %300 = vmatmul.f32.gmra.mxu0 %v45
  %v301 = vpop.f32.mrf.mxu0
  %v302 = vadd.f32 %v189, %v301
  %303 = vmatmul.f32.gmra.mxu0 %v46
  %v304 = vpop.f32.mrf.mxu0
  %v305 = vadd.f32 %v192, %v304
  %306 = vmatmul.f32.gmra.mxu0 %v47
  %v307 = vpop.f32.mrf.mxu0
  %v308 = vadd.f32 %v195, %v307
  %309 = vmatmul.f32.gmra.mxu0 %v48
  %v310 = vpop.f32.mrf.mxu0
  %v311 = vadd.f32 %v198, %v310
  %312 = vmatmul.f32.gmra.mxu0 %v49
  %v313 = vpop.f32.mrf.mxu0
  %v314 = vadd.f32 %v201, %v313
  %315 = vmatmul.f32.gmra.mxu0 %v50
  %v316 = vpop.f32.mrf.mxu0
  %v317 = vadd.f32 %v204, %v316
  %318 = vmatmul.f32.gmra.mxu0 %v51
  %v319 = vpop.f32.mrf.mxu0
  %v320 = vadd.f32 %v207, %v319
  %321 = vmatmul.f32.gmra.mxu0 %v52
  %v322 = vpop.f32.mrf.mxu0
  %v323 = vadd.f32 %v210, %v322
  %324 = vmatmul.f32.gmra.mxu0 %v53
  %v325 = vpop.f32.mrf.mxu0
  %v326 = vadd.f32 %v213, %v325
  %327 = vmatmul.f32.gmra.mxu0 %v54
  %v328 = vpop.f32.mrf.mxu0
  %v329 = vadd.f32 %v216, %v328
  %330 = vmatmul.f32.gmra.mxu0 %v55
  %v331 = vpop.f32.mrf.mxu0
  %v332 = vadd.f32 %v219, %v331
  %333 = vmatmul.f32.gmra.mxu0 %v56
  %v334 = vpop.f32.mrf.mxu0
  %v335 = vadd.f32 %v222, %v334
  %336 = vmatmul.f32.gmra.mxu0 %v57
  %v337 = vpop.f32.mrf.mxu0
  %v338 = vadd.f32 %v225, %v337
  %339 = vmatmul.f32.gmra.mxu0 %v58
  %v340 = vpop.f32.mrf.mxu0
  %v341 = vadd.f32 %v228, %v340
  %342 = vmatmul.f32.gmra.mxu0 %v59
  %v343 = vpop.f32.mrf.mxu0
  %v344 = vadd.f32 %v231, %v343
  %345 = vmatmul.f32.gmra.mxu0 %v60
  %v346 = vpop.f32.mrf.mxu0
  %v347 = vadd.f32 %v234, %v346
  %348 = vmatmul.f32.gmra.mxu0 %v61
  %v349 = vpop.f32.mrf.mxu0
  %v350 = vadd.f32 %v237, %v349
  %351 = vdwg.mxu0
  %v352 = vperm.slane %v23, 0
  %v353 = vadd.f32 %v257, %v352
  %v354 = vadd.f32 %v260, %v352
  %v355 = vadd.f32 %v263, %v352
  %v356 = vadd.f32 %v266, %v352
  %v357 = vadd.f32 %v269, %v352
  %v358 = vadd.f32 %v272, %v352
  %v359 = vadd.f32 %v275, %v352
  %v360 = vadd.f32 %v278, %v352
  %v361 = vadd.f32 %v281, %v352
  %v362 = vadd.f32 %v284, %v352
  %v363 = vadd.f32 %v287, %v352
  %v364 = vadd.f32 %v290, %v352
  %v365 = vadd.f32 %v293, %v352
  %v366 = vadd.f32 %v296, %v352
  %v367 = vadd.f32 %v299, %v352
  %v368 = vadd.f32 %v302, %v352
  %v369 = vadd.f32 %v305, %v352
  %v370 = vadd.f32 %v308, %v352
  %v371 = vadd.f32 %v311, %v352
  %v372 = vadd.f32 %v314, %v352
  %v373 = vadd.f32 %v317, %v352
  %v374 = vadd.f32 %v320, %v352
  %v375 = vadd.f32 %v323, %v352
  %v376 = vadd.f32 %v326, %v352
  %v377 = vadd.f32 %v329, %v352
  %v378 = vadd.f32 %v332, %v352
  %v379 = vadd.f32 %v335, %v352
  %v380 = vadd.f32 %v338, %v352
  %v381 = vadd.f32 %v341, %v352
  %v382 = vadd.f32 %v344, %v352
  %v383 = vadd.f32 %v347, %v352
  %v384 = vadd.f32 %v350, %v352
  %v385 = vmax.f32 %v353, 0.0
  %v386 = vmax.f32 %v354, 0.0
  %v387 = vmax.f32 %v355, 0.0
  %v388 = vmax.f32 %v356, 0.0
  %v389 = vmax.f32 %v357, 0.0
  %v390 = vmax.f32 %v358, 0.0
  %v391 = vmax.f32 %v359, 0.0
  %v392 = vmax.f32 %v360, 0.0
  %v393 = vmax.f32 %v361, 0.0
  %v394 = vmax.f32 %v362, 0.0
  %v395 = vmax.f32 %v363, 0.0
  %v396 = vmax.f32 %v364, 0.0
  %v397 = vmax.f32 %v365, 0.0
  %v398 = vmax.f32 %v366, 0.0
  %v399 = vmax.f32 %v367, 0.0
  %v400 = vmax.f32 %v368, 0.0
  %v401 = vmax.f32 %v369, 0.0
  %v402 = vmax.f32 %v370, 0.0
  %v403 = vmax.f32 %v371, 0.0
  %v404 = vmax.f32 %v372, 0.0
  %v405 = vmax.f32 %v373, 0.0
  %v406 = vmax.f32 %v374, 0.0
  %v407 = vmax.f32 %v375, 0.0
  %v408 = vmax.f32 %v376, 0.0
  %v409 = vmax.f32 %v377, 0.0
  %v410 = vmax.f32 %v378, 0.0
  %v411 = vmax.f32 %v379, 0.0
  %v412 = vmax.f32 %v380, 0.0
  %v413 = vmax.f32 %v381, 0.0
  %v414 = vmax.f32 %v382, 0.0
  %v415 = vmax.f32 %v383, 0.0
  %v416 = vmax.f32 %v384, 0.0
  %417 = vadd.xlane.f32.xlu0 %v385
  %v418 = vpop.xlane.xlu0 %417
  %419 = vadd.xlane.f32.xlu0 %v386
  %v420 = vpop.xlane.xlu0 %419
  %421 = vadd.xlane.f32.xlu0 %v387
  %v422 = vpop.xlane.xlu0 %421
  %423 = vadd.xlane.f32.xlu0 %v388
  %v424 = vpop.xlane.xlu0 %423
  %425 = vadd.xlane.f32.xlu0 %v389
  %v426 = vpop.xlane.xlu0 %425
  %427 = vadd.xlane.f32.xlu0 %v390
  %v428 = vpop.xlane.xlu0 %427
  %429 = vadd.xlane.f32.xlu0 %v391
  %v430 = vpop.xlane.xlu0 %429
  %431 = vadd.xlane.f32.xlu0 %v392
  %v432 = vpop.xlane.xlu0 %431
  %433 = vadd.xlane.f32.xlu0 %v393
  %v434 = vpop.xlane.xlu0 %433
  %435 = vadd.xlane.f32.xlu0 %v394
  %v436 = vpop.xlane.xlu0 %435
  %437 = vadd.xlane.f32.xlu0 %v395
  %v438 = vpop.xlane.xlu0 %437
  %439 = vadd.xlane.f32.xlu0 %v396
  %v440 = vpop.xlane.xlu0 %439
  %441 = vadd.xlane.f32.xlu0 %v397
  %v442 = vpop.xlane.xlu0 %441
  %443 = vadd.xlane.f32.xlu0 %v398
  %v444 = vpop.xlane.xlu0 %443
  %445 = vadd.xlane.f32.xlu0 %v399
  %v446 = vpop.xlane.xlu0 %445
  %447 = vadd.xlane.f32.xlu0 %v400
  %v448 = vpop.xlane.xlu0 %447
  %449 = vadd.xlane.f32.xlu0 %v401
  %v450 = vpop.xlane.xlu0 %449
  %451 = vadd.xlane.f32.xlu0 %v402
  %v452 = vpop.xlane.xlu0 %451
  %453 = vadd.xlane.f32.xlu0 %v403
  %v454 = vpop.xlane.xlu0 %453
  %455 = vadd.xlane.f32.xlu0 %v404
  %v456 = vpop.xlane.xlu0 %455
  %457 = vadd.xlane.f32.xlu0 %v405
  %v458 = vpop.xlane.xlu0 %457
  %459 = vadd.xlane.f32.xlu0 %v406
  %v460 = vpop.xlane.xlu0 %459
  %461 = vadd.xlane.f32.xlu0 %v407
  %v462 = vpop.xlane.xlu0 %461
  %463 = vadd.xlane.f32.xlu0 %v408
  %v464 = vpop.xlane.xlu0 %463
  %465 = vadd.xlane.f32.xlu0 %v409
  %v466 = vpop.xlane.xlu0 %465
  %467 = vadd.xlane.f32.xlu0 %v410
  %v468 = vpop.xlane.xlu0 %467
  %469 = vadd.xlane.f32.xlu0 %v411
  %v470 = vpop.xlane.xlu0 %469
  %471 = vadd.xlane.f32.xlu0 %v412
  %v472 = vpop.xlane.xlu0 %471
  %473 = vadd.xlane.f32.xlu0 %v413
  %v474 = vpop.xlane.xlu0 %473
  %475 = vadd.xlane.f32.xlu0 %v414
  %v476 = vpop.xlane.xlu0 %475
  %477 = vadd.xlane.f32.xlu0 %v415
  %v478 = vpop.xlane.xlu0 %477
  %479 = vadd.xlane.f32.xlu0 %v416
  %v480 = vpop.xlane.xlu0 %479
  %v481 = vmul.f32 %v418, 0.03125
  %v482 = vmul.f32 %v420, 0.03125
  %v483 = vmul.f32 %v422, 0.03125
  %v484 = vmul.f32 %v424, 0.03125
  %v485 = vmul.f32 %v426, 0.03125
  %v486 = vmul.f32 %v428, 0.03125
  %v487 = vmul.f32 %v430, 0.03125
  %v488 = vmul.f32 %v432, 0.03125
  %v489 = vmul.f32 %v434, 0.03125
  %v490 = vmul.f32 %v436, 0.03125
  %v491 = vmul.f32 %v438, 0.03125
  %v492 = vmul.f32 %v440, 0.03125
  %v493 = vmul.f32 %v442, 0.03125
  %v494 = vmul.f32 %v444, 0.03125
  %v495 = vmul.f32 %v446, 0.03125
  %v496 = vmul.f32 %v448, 0.03125
  %v497 = vmul.f32 %v450, 0.03125
  %v498 = vmul.f32 %v452, 0.03125
  %v499 = vmul.f32 %v454, 0.03125
  %v500 = vmul.f32 %v456, 0.03125
  %v501 = vmul.f32 %v458, 0.03125
  %v502 = vmul.f32 %v460, 0.03125
  %v503 = vmul.f32 %v462, 0.03125
  %v504 = vmul.f32 %v464, 0.03125
  %v505 = vmul.f32 %v466, 0.03125
  %v506 = vmul.f32 %v468, 0.03125
  %v507 = vmul.f32 %v470, 0.03125
  %v508 = vmul.f32 %v472, 0.03125
  %v509 = vmul.f32 %v474, 0.03125
  %v510 = vmul.f32 %v476, 0.03125
  %v511 = vmul.f32 %v478, 0.03125
  %v512 = vmul.f32 %v480, 0.03125
  %v513 = vsub.f32 %v385, %v481
  %v514 = vsub.f32 %v386, %v482
  %v515 = vsub.f32 %v387, %v483
  %v516 = vsub.f32 %v388, %v484
  %v517 = vsub.f32 %v389, %v485
  %v518 = vsub.f32 %v390, %v486
  %v519 = vsub.f32 %v391, %v487
  %v520 = vsub.f32 %v392, %v488
  %v521 = vsub.f32 %v393, %v489
  %v522 = vsub.f32 %v394, %v490
  %v523 = vsub.f32 %v395, %v491
  %v524 = vsub.f32 %v396, %v492
  %v525 = vsub.f32 %v397, %v493
  %v526 = vsub.f32 %v398, %v494
  %v527 = vsub.f32 %v399, %v495
  %v528 = vsub.f32 %v400, %v496
  %v529 = vsub.f32 %v401, %v497
  %v530 = vsub.f32 %v402, %v498
  %v531 = vsub.f32 %v403, %v499
  %v532 = vsub.f32 %v404, %v500
  %v533 = vsub.f32 %v405, %v501
  %v534 = vsub.f32 %v406, %v502
  %v535 = vsub.f32 %v407, %v503
  %v536 = vsub.f32 %v408, %v504
  %v537 = vsub.f32 %v409, %v505
  %v538 = vsub.f32 %v410, %v506
  %v539 = vsub.f32 %v411, %v507
  %v540 = vsub.f32 %v412, %v508
  %v541 = vsub.f32 %v413, %v509
  %v542 = vsub.f32 %v414, %v510
  %v543 = vsub.f32 %v415, %v511
  %v544 = vsub.f32 %v416, %v512
  %v545 = vperm.slane %v29, 0
  %v546 = vmul.f32 %v513, %v545
  %v547 = vmul.f32 %v514, %v545
  %v548 = vmul.f32 %v515, %v545
  %v549 = vmul.f32 %v516, %v545
  %v550 = vmul.f32 %v517, %v545
  %v551 = vmul.f32 %v518, %v545
  %v552 = vmul.f32 %v519, %v545
  %v553 = vmul.f32 %v520, %v545
  %v554 = vmul.f32 %v521, %v545
  %v555 = vmul.f32 %v522, %v545
  %v556 = vmul.f32 %v523, %v545
  %v557 = vmul.f32 %v524, %v545
  %v558 = vmul.f32 %v525, %v545
  %v559 = vmul.f32 %v526, %v545
  %v560 = vmul.f32 %v527, %v545
  %v561 = vmul.f32 %v528, %v545
  %v562 = vmul.f32 %v529, %v545
  %v563 = vmul.f32 %v530, %v545
  %v564 = vmul.f32 %v531, %v545
  %v565 = vmul.f32 %v532, %v545
  %v566 = vmul.f32 %v533, %v545
  %v567 = vmul.f32 %v534, %v545
  %v568 = vmul.f32 %v535, %v545
  %v569 = vmul.f32 %v536, %v545
  %v570 = vmul.f32 %v537, %v545
  %v571 = vmul.f32 %v538, %v545
  %v572 = vmul.f32 %v539, %v545
  %v573 = vmul.f32 %v540, %v545
  %v574 = vmul.f32 %v541, %v545
  %v575 = vmul.f32 %v542, %v545
  %v576 = vmul.f32 %v543, %v545
  %v577 = vmul.f32 %v544, %v545
  %v578 = vmul.f32 %v546, %v546
  %v579 = vmul.f32 %v547, %v547
  %v580 = vmul.f32 %v548, %v548
  %v581 = vmul.f32 %v549, %v549
  %v582 = vmul.f32 %v550, %v550
  %v583 = vmul.f32 %v551, %v551
  %v584 = vmul.f32 %v552, %v552
  %v585 = vmul.f32 %v553, %v553
  %v586 = vmul.f32 %v554, %v554
  %v587 = vmul.f32 %v555, %v555
  %v588 = vmul.f32 %v556, %v556
  %v589 = vmul.f32 %v557, %v557
  %v590 = vmul.f32 %v558, %v558
  %v591 = vmul.f32 %v559, %v559
  %v592 = vmul.f32 %v560, %v560
  %v593 = vmul.f32 %v561, %v561
  %v594 = vmul.f32 %v562, %v562
  %v595 = vmul.f32 %v563, %v563
  %v596 = vmul.f32 %v564, %v564
  %v597 = vmul.f32 %v565, %v565
  %v598 = vmul.f32 %v566, %v566
  %v599 = vmul.f32 %v567, %v567
  %v600 = vmul.f32 %v568, %v568
  %v601 = vmul.f32 %v569, %v569
  %v602 = vmul.f32 %v570, %v570
  %v603 = vmul.f32 %v571, %v571
  %v604 = vmul.f32 %v572, %v572
  %v605 = vmul.f32 %v573, %v573
  %v606 = vmul.f32 %v574, %v574
  %v607 = vmul.f32 %v575, %v575
  %v608 = vmul.f32 %v576, %v576
  %v609 = vmul.f32 %v577, %v577
  %610 = vadd.xlane.f32.xlu0 %v578
  %v611 = vpop.xlane.xlu0 %610
  %612 = vadd.xlane.f32.xlu0 %v579
  %v613 = vpop.xlane.xlu0 %612
  %614 = vadd.xlane.f32.xlu0 %v580
  %v615 = vpop.xlane.xlu0 %614
  %616 = vadd.xlane.f32.xlu0 %v581
  %v617 = vpop.xlane.xlu0 %616
  %618 = vadd.xlane.f32.xlu0 %v582
  %v619 = vpop.xlane.xlu0 %618
  %620 = vadd.xlane.f32.xlu0 %v583
  %v621 = vpop.xlane.xlu0 %620
  %622 = vadd.xlane.f32.xlu0 %v584
  %v623 = vpop.xlane.xlu0 %622
  %624 = vadd.xlane.f32.xlu0 %v585
  %v625 = vpop.xlane.xlu0 %624
  %626 = vadd.xlane.f32.xlu0 %v586
  %v627 = vpop.xlane.xlu0 %626
  %628 = vadd.xlane.f32.xlu0 %v587
  %v629 = vpop.xlane.xlu0 %628
  %630 = vadd.xlane.f32.xlu0 %v588
  %v631 = vpop.xlane.xlu0 %630
  %632 = vadd.xlane.f32.xlu0 %v589
  %v633 = vpop.xlane.xlu0 %632
  %634 = vadd.xlane.f32.xlu0 %v590
  %v635 = vpop.xlane.xlu0 %634
  %636 = vadd.xlane.f32.xlu0 %v591
  %v637 = vpop.xlane.xlu0 %636
  %638 = vadd.xlane.f32.xlu0 %v592
  %v639 = vpop.xlane.xlu0 %638
  %640 = vadd.xlane.f32.xlu0 %v593
  %v641 = vpop.xlane.xlu0 %640
  %642 = vadd.xlane.f32.xlu0 %v594
  %v643 = vpop.xlane.xlu0 %642
  %644 = vadd.xlane.f32.xlu0 %v595
  %v645 = vpop.xlane.xlu0 %644
  %646 = vadd.xlane.f32.xlu0 %v596
  %v647 = vpop.xlane.xlu0 %646
  %648 = vadd.xlane.f32.xlu0 %v597
  %v649 = vpop.xlane.xlu0 %648
  %650 = vadd.xlane.f32.xlu0 %v598
  %v651 = vpop.xlane.xlu0 %650
  %652 = vadd.xlane.f32.xlu0 %v599
  %v653 = vpop.xlane.xlu0 %652
  %654 = vadd.xlane.f32.xlu0 %v600
  %v655 = vpop.xlane.xlu0 %654
  %656 = vadd.xlane.f32.xlu0 %v601
  %v657 = vpop.xlane.xlu0 %656
  %658 = vadd.xlane.f32.xlu0 %v602
  %v659 = vpop.xlane.xlu0 %658
  %660 = vadd.xlane.f32.xlu0 %v603
  %v661 = vpop.xlane.xlu0 %660
  %662 = vadd.xlane.f32.xlu0 %v604
  %v663 = vpop.xlane.xlu0 %662
  %664 = vadd.xlane.f32.xlu0 %v605
  %v665 = vpop.xlane.xlu0 %664
  %666 = vadd.xlane.f32.xlu0 %v606
  %v667 = vpop.xlane.xlu0 %666
  %668 = vadd.xlane.f32.xlu0 %v607
  %v669 = vpop.xlane.xlu0 %668
  %670 = vadd.xlane.f32.xlu0 %v608
  %v671 = vpop.xlane.xlu0 %670
  %672 = vadd.xlane.f32.xlu0 %v609
  %v673 = vpop.xlane.xlu0 %672
  %v674 = vmul.f32 %v611, 0.03125
  %v675 = vmul.f32 %v613, 0.03125
  %v676 = vmul.f32 %v615, 0.03125
  %v677 = vmul.f32 %v617, 0.03125
  %v678 = vmul.f32 %v619, 0.03125
  %v679 = vmul.f32 %v621, 0.03125
  %v680 = vmul.f32 %v623, 0.03125
  %v681 = vmul.f32 %v625, 0.03125
  %v682 = vmul.f32 %v627, 0.03125
  %v683 = vmul.f32 %v629, 0.03125
  %v684 = vmul.f32 %v631, 0.03125
  %v685 = vmul.f32 %v633, 0.03125
  %v686 = vmul.f32 %v635, 0.03125
  %v687 = vmul.f32 %v637, 0.03125
  %v688 = vmul.f32 %v639, 0.03125
  %v689 = vmul.f32 %v641, 0.03125
  %v690 = vmul.f32 %v643, 0.03125
  %v691 = vmul.f32 %v645, 0.03125
  %v692 = vmul.f32 %v647, 0.03125
  %v693 = vmul.f32 %v649, 0.03125
  %v694 = vmul.f32 %v651, 0.03125
  %v695 = vmul.f32 %v653, 0.03125
  %v696 = vmul.f32 %v655, 0.03125
  %v697 = vmul.f32 %v657, 0.03125
  %v698 = vmul.f32 %v659, 0.03125
  %v699 = vmul.f32 %v661, 0.03125
  %v700 = vmul.f32 %v663, 0.03125
  %v701 = vmul.f32 %v665, 0.03125
  %v702 = vmul.f32 %v667, 0.03125
  %v703 = vmul.f32 %v669, 0.03125
  %v704 = vmul.f32 %v671, 0.03125
  %v705 = vmul.f32 %v673, 0.03125
  %v706 = vadd.f32 %v674, 1e-05
  %v707 = vadd.f32 %v675, 1e-05
  %v708 = vadd.f32 %v676, 1e-05
  %v709 = vadd.f32 %v677, 1e-05
  %v710 = vadd.f32 %v678, 1e-05
  %v711 = vadd.f32 %v679, 1e-05
  %v712 = vadd.f32 %v680, 1e-05
  %v713 = vadd.f32 %v681, 1e-05
  %v714 = vadd.f32 %v682, 1e-05
  %v715 = vadd.f32 %v683, 1e-05
  %v716 = vadd.f32 %v684, 1e-05
  %v717 = vadd.f32 %v685, 1e-05
  %v718 = vadd.f32 %v686, 1e-05
  %v719 = vadd.f32 %v687, 1e-05
  %v720 = vadd.f32 %v688, 1e-05
  %v721 = vadd.f32 %v689, 1e-05
  %v722 = vadd.f32 %v690, 1e-05
  %v723 = vadd.f32 %v691, 1e-05
  %v724 = vadd.f32 %v692, 1e-05
  %v725 = vadd.f32 %v693, 1e-05
  %v726 = vadd.f32 %v694, 1e-05
  %v727 = vadd.f32 %v695, 1e-05
  %v728 = vadd.f32 %v696, 1e-05
  %v729 = vadd.f32 %v697, 1e-05
  %v730 = vadd.f32 %v698, 1e-05
  %v731 = vadd.f32 %v699, 1e-05
  %v732 = vadd.f32 %v700, 1e-05
  %v733 = vadd.f32 %v701, 1e-05
  %v734 = vadd.f32 %v702, 1e-05
  %v735 = vadd.f32 %v703, 1e-05
  %v736 = vadd.f32 %v704, 1e-05
  %v737 = vadd.f32 %v705, 1e-05
  %v738 = vrsqrt.pop %v706
  %v739 = vmul.f32 %v738, %v706
  %v740 = vmul.f32 %v739, %v738
  %v741 = vmul.f32 0.5, %v740
  %v742 = vsub.f32 1.5, %v741
  %v743 = vmul.f32 %v738, %v742
  %vm744 = vweird.f32 %v706
  %vm745 = vweird.f32 %v738
  %vm746 = vmor %vm744, %vm745
  %v747 = vsel %vm746, %v738, %v743
  %v748 = vrsqrt.pop %v707
  %v749 = vmul.f32 %v748, %v707
  %v750 = vmul.f32 %v749, %v748
  %v751 = vmul.f32 0.5, %v750
  %v752 = vsub.f32 1.5, %v751
  %v753 = vmul.f32 %v748, %v752
  %vm754 = vweird.f32 %v707
  %vm755 = vweird.f32 %v748
  %vm756 = vmor %vm754, %vm755
  %v757 = vsel %vm756, %v748, %v753
  %v758 = vrsqrt.pop %v708
  %v759 = vmul.f32 %v758, %v708
  %v760 = vmul.f32 %v759, %v758
  %v761 = vmul.f32 0.5, %v760
  %v762 = vsub.f32 1.5, %v761
  %v763 = vmul.f32 %v758, %v762
  %vm764 = vweird.f32 %v708
  %vm765 = vweird.f32 %v758
  %vm766 = vmor %vm764, %vm765
  %v767 = vsel %vm766, %v758, %v763
  %v768 = vrsqrt.pop %v709
  %v769 = vmul.f32 %v768, %v709
  %v770 = vmul.f32 %v769, %v768
  %v771 = vmul.f32 0.5, %v770
  %v772 = vsub.f32 1.5, %v771
  %v773 = vmul.f32 %v768, %v772
  %vm774 = vweird.f32 %v709
  %vm775 = vweird.f32 %v768
  %vm776 = vmor %vm774, %vm775
  %v777 = vsel %vm776, %v768, %v773
  %v778 = vrsqrt.pop %v710
  %v779 = vmul.f32 %v778, %v710
  %v780 = vmul.f32 %v779, %v778
  %v781 = vmul.f32 0.5, %v780
  %v782 = vsub.f32 1.5, %v781
  %v783 = vmul.f32 %v778, %v782
  %vm784 = vweird.f32 %v710
  %vm785 = vweird.f32 %v778
  %vm786 = vmor %vm784, %vm785
  %v787 = vsel %vm786, %v778, %v783
  %v788 = vrsqrt.pop %v711
  %v789 = vmul.f32 %v788, %v711
  %v790 = vmul.f32 %v789, %v788
  %v791 = vmul.f32 0.5, %v790
  %v792 = vsub.f32 1.5, %v791
  %v793 = vmul.f32 %v788, %v792
  %vm794 = vweird.f32 %v711
  %vm795 = vweird.f32 %v788
  %vm796 = vmor %vm794, %vm795
  %v797 = vsel %vm796, %v788, %v793
  %v798 = vrsqrt.pop %v712
  %v799 = vmul.f32 %v798, %v712
  %v800 = vmul.f32 %v799, %v798
  %v801 = vmul.f32 0.5, %v800
  %v802 = vsub.f32 1.5, %v801
  %v803 = vmul.f32 %v798, %v802
  %vm804 = vweird.f32 %v712
  %vm805 = vweird.f32 %v798
  %vm806 = vmor %vm804, %vm805
  %v807 = vsel %vm806, %v798, %v803
  %v808 = vrsqrt.pop %v713
  %v809 = vmul.f32 %v808, %v713
  %v810 = vmul.f32 %v809, %v808
  %v811 = vmul.f32 0.5, %v810
  %v812 = vsub.f32 1.5, %v811
  %v813 = vmul.f32 %v808, %v812
  %vm814 = vweird.f32 %v713
  %vm815 = vweird.f32 %v808
  %vm816 = vmor %vm814, %vm815
  %v817 = vsel %vm816, %v808, %v813
  %v818 = vrsqrt.pop %v714
  %v819 = vmul.f32 %v818, %v714
  %v820 = vmul.f32 %v819, %v818
  %v821 = vmul.f32 0.5, %v820
  %v822 = vsub.f32 1.5, %v821
  %v823 = vmul.f32 %v818, %v822
  %vm824 = vweird.f32 %v714
  %vm825 = vweird.f32 %v818
  %vm826 = vmor %vm824, %vm825
  %v827 = vsel %vm826, %v818, %v823
  %v828 = vrsqrt.pop %v715
  %v829 = vmul.f32 %v828, %v715
  %v830 = vmul.f32 %v829, %v828
  %v831 = vmul.f32 0.5, %v830
  %v832 = vsub.f32 1.5, %v831
  %v833 = vmul.f32 %v828, %v832
  %vm834 = vweird.f32 %v715
  %vm835 = vweird.f32 %v828
  %vm836 = vmor %vm834, %vm835
  %v837 = vsel %vm836, %v828, %v833
  %v838 = vrsqrt.pop %v716
  %v839 = vmul.f32 %v838, %v716
  %v840 = vmul.f32 %v839, %v838
  %v841 = vmul.f32 0.5, %v840
  %v842 = vsub.f32 1.5, %v841
  %v843 = vmul.f32 %v838, %v842
  %vm844 = vweird.f32 %v716
  %vm845 = vweird.f32 %v838
  %vm846 = vmor %vm844, %vm845
  %v847 = vsel %vm846, %v838, %v843
  %v848 = vrsqrt.pop %v717
  %v849 = vmul.f32 %v848, %v717
  %v850 = vmul.f32 %v849, %v848
  %v851 = vmul.f32 0.5, %v850
  %v852 = vsub.f32 1.5, %v851
  %v853 = vmul.f32 %v848, %v852
  %vm854 = vweird.f32 %v717
  %vm855 = vweird.f32 %v848
  %vm856 = vmor %vm854, %vm855
  %v857 = vsel %vm856, %v848, %v853
  %v858 = vrsqrt.pop %v718
  %v859 = vmul.f32 %v858, %v718
  %v860 = vmul.f32 %v859, %v858
  %v861 = vmul.f32 0.5, %v860
  %v862 = vsub.f32 1.5, %v861
  %v863 = vmul.f32 %v858, %v862
  %vm864 = vweird.f32 %v718
  %vm865 = vweird.f32 %v858
  %vm866 = vmor %vm864, %vm865
  %v867 = vsel %vm866, %v858, %v863
  %v868 = vrsqrt.pop %v719
  %v869 = vmul.f32 %v868, %v719
  %v870 = vmul.f32 %v869, %v868
  %v871 = vmul.f32 0.5, %v870
  %v872 = vsub.f32 1.5, %v871
  %v873 = vmul.f32 %v868, %v872
  %vm874 = vweird.f32 %v719
  %vm875 = vweird.f32 %v868
  %vm876 = vmor %vm874, %vm875
  %v877 = vsel %vm876, %v868, %v873
  %v878 = vrsqrt.pop %v720
  %v879 = vmul.f32 %v878, %v720
  %v880 = vmul.f32 %v879, %v878
  %v881 = vmul.f32 0.5, %v880
  %v882 = vsub.f32 1.5, %v881
  %v883 = vmul.f32 %v878, %v882
  %vm884 = vweird.f32 %v720
  %vm885 = vweird.f32 %v878
  %vm886 = vmor %vm884, %vm885
  %v887 = vsel %vm886, %v878, %v883
  %v888 = vrsqrt.pop %v721
  %v889 = vmul.f32 %v888, %v721
  %v890 = vmul.f32 %v889, %v888
  %v891 = vmul.f32 0.5, %v890
  %v892 = vsub.f32 1.5, %v891
  %v893 = vmul.f32 %v888, %v892
  %vm894 = vweird.f32 %v721
  %vm895 = vweird.f32 %v888
  %vm896 = vmor %vm894, %vm895
  %v897 = vsel %vm896, %v888, %v893
  %v898 = vrsqrt.pop %v722
  %v899 = vmul.f32 %v898, %v722
  %v900 = vmul.f32 %v899, %v898
  %v901 = vmul.f32 0.5, %v900
  %v902 = vsub.f32 1.5, %v901
  %v903 = vmul.f32 %v898, %v902
  %vm904 = vweird.f32 %v722
  %vm905 = vweird.f32 %v898
  %vm906 = vmor %vm904, %vm905
  %v907 = vsel %vm906, %v898, %v903
  %v908 = vrsqrt.pop %v723
  %v909 = vmul.f32 %v908, %v723
  %v910 = vmul.f32 %v909, %v908
  %v911 = vmul.f32 0.5, %v910
  %v912 = vsub.f32 1.5, %v911
  %v913 = vmul.f32 %v908, %v912
  %vm914 = vweird.f32 %v723
  %vm915 = vweird.f32 %v908
  %vm916 = vmor %vm914, %vm915
  %v917 = vsel %vm916, %v908, %v913
  %v918 = vrsqrt.pop %v724
  %v919 = vmul.f32 %v918, %v724
  %v920 = vmul.f32 %v919, %v918
  %v921 = vmul.f32 0.5, %v920
  %v922 = vsub.f32 1.5, %v921
  %v923 = vmul.f32 %v918, %v922
  %vm924 = vweird.f32 %v724
  %vm925 = vweird.f32 %v918
  %vm926 = vmor %vm924, %vm925
  %v927 = vsel %vm926, %v918, %v923
  %v928 = vrsqrt.pop %v725
  %v929 = vmul.f32 %v928, %v725
  %v930 = vmul.f32 %v929, %v928
  %v931 = vmul.f32 0.5, %v930
  %v932 = vsub.f32 1.5, %v931
  %v933 = vmul.f32 %v928, %v932
  %vm934 = vweird.f32 %v725
  %vm935 = vweird.f32 %v928
  %vm936 = vmor %vm934, %vm935
  %v937 = vsel %vm936, %v928, %v933
  %v938 = vrsqrt.pop %v726
  %v939 = vmul.f32 %v938, %v726
  %v940 = vmul.f32 %v939, %v938
  %v941 = vmul.f32 0.5, %v940
  %v942 = vsub.f32 1.5, %v941
  %v943 = vmul.f32 %v938, %v942
  %vm944 = vweird.f32 %v726
  %vm945 = vweird.f32 %v938
  %vm946 = vmor %vm944, %vm945
  %v947 = vsel %vm946, %v938, %v943
  %v948 = vrsqrt.pop %v727
  %v949 = vmul.f32 %v948, %v727
  %v950 = vmul.f32 %v949, %v948
  %v951 = vmul.f32 0.5, %v950
  %v952 = vsub.f32 1.5, %v951
  %v953 = vmul.f32 %v948, %v952
  %vm954 = vweird.f32 %v727
  %vm955 = vweird.f32 %v948
  %vm956 = vmor %vm954, %vm955
  %v957 = vsel %vm956, %v948, %v953
  %v958 = vrsqrt.pop %v728
  %v959 = vmul.f32 %v958, %v728
  %v960 = vmul.f32 %v959, %v958
  %v961 = vmul.f32 0.5, %v960
  %v962 = vsub.f32 1.5, %v961
  %v963 = vmul.f32 %v958, %v962
  %vm964 = vweird.f32 %v728
  %vm965 = vweird.f32 %v958
  %vm966 = vmor %vm964, %vm965
  %v967 = vsel %vm966, %v958, %v963
  %v968 = vrsqrt.pop %v729
  %v969 = vmul.f32 %v968, %v729
  %v970 = vmul.f32 %v969, %v968
  %v971 = vmul.f32 0.5, %v970
  %v972 = vsub.f32 1.5, %v971
  %v973 = vmul.f32 %v968, %v972
  %vm974 = vweird.f32 %v729
  %vm975 = vweird.f32 %v968
  %vm976 = vmor %vm974, %vm975
  %v977 = vsel %vm976, %v968, %v973
  %v978 = vrsqrt.pop %v730
  %v979 = vmul.f32 %v978, %v730
  %v980 = vmul.f32 %v979, %v978
  %v981 = vmul.f32 0.5, %v980
  %v982 = vsub.f32 1.5, %v981
  %v983 = vmul.f32 %v978, %v982
  %vm984 = vweird.f32 %v730
  %vm985 = vweird.f32 %v978
  %vm986 = vmor %vm984, %vm985
  %v987 = vsel %vm986, %v978, %v983
  %v988 = vrsqrt.pop %v731
  %v989 = vmul.f32 %v988, %v731
  %v990 = vmul.f32 %v989, %v988
  %v991 = vmul.f32 0.5, %v990
  %v992 = vsub.f32 1.5, %v991
  %v993 = vmul.f32 %v988, %v992
  %vm994 = vweird.f32 %v731
  %vm995 = vweird.f32 %v988
  %vm996 = vmor %vm994, %vm995
  %v997 = vsel %vm996, %v988, %v993
  %v998 = vrsqrt.pop %v732
  %v999 = vmul.f32 %v998, %v732
  %v1000 = vmul.f32 %v999, %v998
  %v1001 = vmul.f32 0.5, %v1000
  %v1002 = vsub.f32 1.5, %v1001
  %v1003 = vmul.f32 %v998, %v1002
  %vm1004 = vweird.f32 %v732
  %vm1005 = vweird.f32 %v998
  %vm1006 = vmor %vm1004, %vm1005
  %v1007 = vsel %vm1006, %v998, %v1003
  %v1008 = vrsqrt.pop %v733
  %v1009 = vmul.f32 %v1008, %v733
  %v1010 = vmul.f32 %v1009, %v1008
  %v1011 = vmul.f32 0.5, %v1010
  %v1012 = vsub.f32 1.5, %v1011
  %v1013 = vmul.f32 %v1008, %v1012
  %vm1014 = vweird.f32 %v733
  %vm1015 = vweird.f32 %v1008
  %vm1016 = vmor %vm1014, %vm1015
  %v1017 = vsel %vm1016, %v1008, %v1013
  %v1018 = vrsqrt.pop %v734
  %v1019 = vmul.f32 %v1018, %v734
  %v1020 = vmul.f32 %v1019, %v1018
  %v1021 = vmul.f32 0.5, %v1020
  %v1022 = vsub.f32 1.5, %v1021
  %v1023 = vmul.f32 %v1018, %v1022
  %vm1024 = vweird.f32 %v734
  %vm1025 = vweird.f32 %v1018
  %vm1026 = vmor %vm1024, %vm1025
  %v1027 = vsel %vm1026, %v1018, %v1023
  %v1028 = vrsqrt.pop %v735
  %v1029 = vmul.f32 %v1028, %v735
  %v1030 = vmul.f32 %v1029, %v1028
  %v1031 = vmul.f32 0.5, %v1030
  %v1032 = vsub.f32 1.5, %v1031
  %v1033 = vmul.f32 %v1028, %v1032
  %vm1034 = vweird.f32 %v735
  %vm1035 = vweird.f32 %v1028
  %vm1036 = vmor %vm1034, %vm1035
  %v1037 = vsel %vm1036, %v1028, %v1033
  %v1038 = vrsqrt.pop %v736
  %v1039 = vmul.f32 %v1038, %v736
  %v1040 = vmul.f32 %v1039, %v1038
  %v1041 = vmul.f32 0.5, %v1040
  %v1042 = vsub.f32 1.5, %v1041
  %v1043 = vmul.f32 %v1038, %v1042
  %vm1044 = vweird.f32 %v736
  %vm1045 = vweird.f32 %v1038
  %vm1046 = vmor %vm1044, %vm1045
  %v1047 = vsel %vm1046, %v1038, %v1043
  %v1048 = vrsqrt.pop %v737
  %v1049 = vmul.f32 %v1048, %v737
  %v1050 = vmul.f32 %v1049, %v1048
  %v1051 = vmul.f32 0.5, %v1050
  %v1052 = vsub.f32 1.5, %v1051
  %v1053 = vmul.f32 %v1048, %v1052
  %vm1054 = vweird.f32 %v737
  %vm1055 = vweird.f32 %v1048
  %vm1056 = vmor %vm1054, %vm1055
  %v1057 = vsel %vm1056, %v1048, %v1053
  %v1058 = vmul.f32 %v546, %v747
  %v1059 = vmul.f32 %v547, %v757
  %v1060 = vmul.f32 %v548, %v767
  %v1061 = vmul.f32 %v549, %v777
  %v1062 = vmul.f32 %v550, %v787
  %v1063 = vmul.f32 %v551, %v797
  %v1064 = vmul.f32 %v552, %v807
  %v1065 = vmul.f32 %v553, %v817
  %v1066 = vmul.f32 %v554, %v827
  %v1067 = vmul.f32 %v555, %v837
  %v1068 = vmul.f32 %v556, %v847
  %v1069 = vmul.f32 %v557, %v857
  %v1070 = vmul.f32 %v558, %v867
  %v1071 = vmul.f32 %v559, %v877
  %v1072 = vmul.f32 %v560, %v887
  %v1073 = vmul.f32 %v561, %v897
  %v1074 = vmul.f32 %v562, %v907
  %v1075 = vmul.f32 %v563, %v917
  %v1076 = vmul.f32 %v564, %v927
  %v1077 = vmul.f32 %v565, %v937
  %v1078 = vmul.f32 %v566, %v947
  %v1079 = vmul.f32 %v567, %v957
  %v1080 = vmul.f32 %v568, %v967
  %v1081 = vmul.f32 %v569, %v977
  %v1082 = vmul.f32 %v570, %v987
  %v1083 = vmul.f32 %v571, %v997
  %v1084 = vmul.f32 %v572, %v1007
  %v1085 = vmul.f32 %v573, %v1017
  %v1086 = vmul.f32 %v574, %v1027
  %v1087 = vmul.f32 %v575, %v1037
  %v1088 = vmul.f32 %v576, %v1047
  %v1089 = vmul.f32 %v577, %v1057
  %v1090 = vperm.slane %v24, 0
  %v1091 = vmul.f32 %v1058, %v1090
  %v1092 = vmul.f32 %v1059, %v1090
  %v1093 = vmul.f32 %v1060, %v1090
  %v1094 = vmul.f32 %v1061, %v1090
  %v1095 = vmul.f32 %v1062, %v1090
  %v1096 = vmul.f32 %v1063, %v1090
  %v1097 = vmul.f32 %v1064, %v1090
  %v1098 = vmul.f32 %v1065, %v1090
  %v1099 = vmul.f32 %v1066, %v1090
  %v1100 = vmul.f32 %v1067, %v1090
  %v1101 = vmul.f32 %v1068, %v1090
  %v1102 = vmul.f32 %v1069, %v1090
  %v1103 = vmul.f32 %v1070, %v1090
  %v1104 = vmul.f32 %v1071, %v1090
  %v1105 = vmul.f32 %v1072, %v1090
  %v1106 = vmul.f32 %v1073, %v1090
  %v1107 = vmul.f32 %v1074, %v1090
  %v1108 = vmul.f32 %v1075, %v1090
  %v1109 = vmul.f32 %v1076, %v1090
  %v1110 = vmul.f32 %v1077, %v1090
  %v1111 = vmul.f32 %v1078, %v1090
  %v1112 = vmul.f32 %v1079, %v1090
  %v1113 = vmul.f32 %v1080, %v1090
  %v1114 = vmul.f32 %v1081, %v1090
  %v1115 = vmul.f32 %v1082, %v1090
  %v1116 = vmul.f32 %v1083, %v1090
  %v1117 = vmul.f32 %v1084, %v1090
  %v1118 = vmul.f32 %v1085, %v1090
  %v1119 = vmul.f32 %v1086, %v1090
  %v1120 = vmul.f32 %v1087, %v1090
  %v1121 = vmul.f32 %v1088, %v1090
  %v1122 = vmul.f32 %v1089, %v1090
  %v1123 = vperm.slane %v25, 0
  %v1124 = vadd.f32 %v1091, %v1123
  %v1125 = vadd.f32 %v1092, %v1123
  %v1126 = vadd.f32 %v1093, %v1123
  %v1127 = vadd.f32 %v1094, %v1123
  %v1128 = vadd.f32 %v1095, %v1123
  %v1129 = vadd.f32 %v1096, %v1123
  %v1130 = vadd.f32 %v1097, %v1123
  %v1131 = vadd.f32 %v1098, %v1123
  %v1132 = vadd.f32 %v1099, %v1123
  %v1133 = vadd.f32 %v1100, %v1123
  %v1134 = vadd.f32 %v1101, %v1123
  %v1135 = vadd.f32 %v1102, %v1123
  %v1136 = vadd.f32 %v1103, %v1123
  %v1137 = vadd.f32 %v1104, %v1123
  %v1138 = vadd.f32 %v1105, %v1123
  %v1139 = vadd.f32 %v1106, %v1123
  %v1140 = vadd.f32 %v1107, %v1123
  %v1141 = vadd.f32 %v1108, %v1123
  %v1142 = vadd.f32 %v1109, %v1123
  %v1143 = vadd.f32 %v1110, %v1123
  %v1144 = vadd.f32 %v1111, %v1123
  %v1145 = vadd.f32 %v1112, %v1123
  %v1146 = vadd.f32 %v1113, %v1123
  %v1147 = vadd.f32 %v1114, %v1123
  %v1148 = vadd.f32 %v1115, %v1123
  %v1149 = vadd.f32 %v1116, %v1123
  %v1150 = vadd.f32 %v1117, %v1123
  %v1151 = vadd.f32 %v1118, %v1123
  %v1152 = vadd.f32 %v1119, %v1123
  %v1153 = vadd.f32 %v1120, %v1123
  %v1154 = vadd.f32 %v1121, %v1123
  %v1155 = vadd.f32 %v1122, %v1123
  %v1156 = vld [vmem:[%s4] sm:$0xff]
  %v1157 = vld [vmem:[%s4 + $0x8] sm:$0xff]
  %v1158 = vld [vmem:[%s4 + $0x10] sm:$0xff]
  %v1159 = vld [vmem:[%s4 + $0x18] sm:$0xff]
  %v1160 = vld [vmem:[%s4 + $0x20] sm:$0xff]
  %v1161 = vld [vmem:[%s4 + $0x28] sm:$0xff]
  %v1162 = vld [vmem:[%s4 + $0x30] sm:$0xff]
  %v1163 = vld [vmem:[%s4 + $0x38] sm:$0xff]
  %v1164 = vld [vmem:[%s4 + $0x40] sm:$0xff]
  %v1165 = vld [vmem:[%s4 + $0x48] sm:$0xff]
  %v1166 = vld [vmem:[%s4 + $0x50] sm:$0xff]
  %v1167 = vld [vmem:[%s4 + $0x58] sm:$0xff]
  %v1168 = vld [vmem:[%s4 + $0x60] sm:$0xff]
  %v1169 = vld [vmem:[%s4 + $0x68] sm:$0xff]
  %v1170 = vld [vmem:[%s4 + $0x70] sm:$0xff]
  %v1171 = vld [vmem:[%s4 + $0x78] sm:$0xff]
  %v1172 = vperm.slane %v26, 0
  %1173 = vmatpush.msra.mxu0 %v1171
  %1174 = vmatpush.msra.mxu0 %v1170
  %1175 = vmatpush.msra.mxu0 %v1169
  %1176 = vmatpush.msra.mxu0 %v1168
  %1177 = vmatpush.msra.mxu0 %v1167
  %1178 = vmatpush.msra.mxu0 %v1166
  %1179 = vmatpush.msra.mxu0 %v1165
  %1180 = vmatpush.msra.mxu0 %v1164
  %1181 = vmatpush.msra.mxu0 %v1163
  %1182 = vmatpush.msra.mxu0 %v1162
  %1183 = vmatpush.msra.mxu0 %v1161
  %1184 = vmatpush.msra.mxu0 %v1160
  %1185 = vmatpush.msra.mxu0 %v1159
  %1186 = vmatpush.msra.mxu0 %v1158
  %1187 = vmatpush.msra.mxu0 %v1157
  %1188 = vmatpush.msra.mxu0 %v1156
  %1189 = vmatmul.f32.gmra.mxu0 %v1124
  %v1190 = vpop.f32.mrf.mxu0
  %v1191 = vadd.f32 %v1172, %v1190
  %1192 = vmatmul.f32.gmra.mxu0 %v1125
  %v1193 = vpop.f32.mrf.mxu0
  %v1194 = vadd.f32 %v1172, %v1193
  %1195 = vmatmul.f32.gmra.mxu0 %v1126
  %v1196 = vpop.f32.mrf.mxu0
  %v1197 = vadd.f32 %v1172, %v1196
  %1198 = vmatmul.f32.gmra.mxu0 %v1127
  %v1199 = vpop.f32.mrf.mxu0
  %v1200 = vadd.f32 %v1172, %v1199
  %1201 = vmatmul.f32.gmra.mxu0 %v1128
  %v1202 = vpop.f32.mrf.mxu0
  %v1203 = vadd.f32 %v1172, %v1202
  %1204 = vmatmul.f32.gmra.mxu0 %v1129
  %v1205 = vpop.f32.mrf.mxu0
  %v1206 = vadd.f32 %v1172, %v1205
  %1207 = vmatmul.f32.gmra.mxu0 %v1130
  %v1208 = vpop.f32.mrf.mxu0
  %v1209 = vadd.f32 %v1172, %v1208
  %1210 = vmatmul.f32.gmra.mxu0 %v1131
  %v1211 = vpop.f32.mrf.mxu0
  %v1212 = vadd.f32 %v1172, %v1211
  %1213 = vmatmul.f32.gmra.mxu0 %v1132
  %v1214 = vpop.f32.mrf.mxu0
  %v1215 = vadd.f32 %v1172, %v1214
  %1216 = vmatmul.f32.gmra.mxu0 %v1133
  %v1217 = vpop.f32.mrf.mxu0
  %v1218 = vadd.f32 %v1172, %v1217
  %1219 = vmatmul.f32.gmra.mxu0 %v1134
  %v1220 = vpop.f32.mrf.mxu0
  %v1221 = vadd.f32 %v1172, %v1220
  %1222 = vmatmul.f32.gmra.mxu0 %v1135
  %v1223 = vpop.f32.mrf.mxu0
  %v1224 = vadd.f32 %v1172, %v1223
  %1225 = vmatmul.f32.gmra.mxu0 %v1136
  %v1226 = vpop.f32.mrf.mxu0
  %v1227 = vadd.f32 %v1172, %v1226
  %1228 = vmatmul.f32.gmra.mxu0 %v1137
  %v1229 = vpop.f32.mrf.mxu0
  %v1230 = vadd.f32 %v1172, %v1229
  %1231 = vmatmul.f32.gmra.mxu0 %v1138
  %v1232 = vpop.f32.mrf.mxu0
  %v1233 = vadd.f32 %v1172, %v1232
  %1234 = vmatmul.f32.gmra.mxu0 %v1139
  %v1235 = vpop.f32.mrf.mxu0
  %v1236 = vadd.f32 %v1172, %v1235
  %1237 = vmatmul.f32.gmra.mxu0 %v1140
  %v1238 = vpop.f32.mrf.mxu0
  %v1239 = vadd.f32 %v1172, %v1238
  %1240 = vmatmul.f32.gmra.mxu0 %v1141
  %v1241 = vpop.f32.mrf.mxu0
  %v1242 = vadd.f32 %v1172, %v1241
  %1243 = vmatmul.f32.gmra.mxu0 %v1142
  %v1244 = vpop.f32.mrf.mxu0
  %v1245 = vadd.f32 %v1172, %v1244
  %1246 = vmatmul.f32.gmra.mxu0 %v1143
  %v1247 = vpop.f32.mrf.mxu0
  %v1248 = vadd.f32 %v1172, %v1247
  %1249 = vmatmul.f32.gmra.mxu0 %v1144
  %v1250 = vpop.f32.mrf.mxu0
  %v1251 = vadd.f32 %v1172, %v1250
  %1252 = vmatmul.f32.gmra.mxu0 %v1145
  %v1253 = vpop.f32.mrf.mxu0
  %v1254 = vadd.f32 %v1172, %v1253
  %1255 = vmatmul.f32.gmra.mxu0 %v1146
  %v1256 = vpop.f32.mrf.mxu0
  %v1257 = vadd.f32 %v1172, %v1256
  %1258 = vmatmul.f32.gmra.mxu0 %v1147
  %v1259 = vpop.f32.mrf.mxu0
  %v1260 = vadd.f32 %v1172, %v1259
  %1261 = vmatmul.f32.gmra.mxu0 %v1148
  %v1262 = vpop.f32.mrf.mxu0
  %v1263 = vadd.f32 %v1172, %v1262
  %1264 = vmatmul.f32.gmra.mxu0 %v1149
  %v1265 = vpop.f32.mrf.mxu0
  %v1266 = vadd.f32 %v1172, %v1265
  %1267 = vmatmul.f32.gmra.mxu0 %v1150
  %v1268 = vpop.f32.mrf.mxu0
  %v1269 = vadd.f32 %v1172, %v1268
  %1270 = vmatmul.f32.gmra.mxu0 %v1151
  %v1271 = vpop.f32.mrf.mxu0
  %v1272 = vadd.f32 %v1172, %v1271
  %1273 = vmatmul.f32.gmra.mxu0 %v1152
  %v1274 = vpop.f32.mrf.mxu0
  %v1275 = vadd.f32 %v1172, %v1274
  %1276 = vmatmul.f32.gmra.mxu0 %v1153
  %v1277 = vpop.f32.mrf.mxu0
  %v1278 = vadd.f32 %v1172, %v1277
  %1279 = vmatmul.f32.gmra.mxu0 %v1154
  %v1280 = vpop.f32.mrf.mxu0
  %v1281 = vadd.f32 %v1172, %v1280
  %1282 = vmatmul.f32.gmra.mxu0 %v1155
  %v1283 = vpop.f32.mrf.mxu0
  %v1284 = vadd.f32 %v1172, %v1283
  %1285 = vdwg.mxu0
  %v1286 = vmax.f32 %v1191, 0.0
  %v1287 = vmax.f32 %v1194, 0.0
  %v1288 = vmax.f32 %v1197, 0.0
  %v1289 = vmax.f32 %v1200, 0.0
  %v1290 = vmax.f32 %v1203, 0.0
  %v1291 = vmax.f32 %v1206, 0.0
  %v1292 = vmax.f32 %v1209, 0.0
  %v1293 = vmax.f32 %v1212, 0.0
  %v1294 = vmax.f32 %v1215, 0.0
  %v1295 = vmax.f32 %v1218, 0.0
  %v1296 = vmax.f32 %v1221, 0.0
  %v1297 = vmax.f32 %v1224, 0.0
  %v1298 = vmax.f32 %v1227, 0.0
  %v1299 = vmax.f32 %v1230, 0.0
  %v1300 = vmax.f32 %v1233, 0.0
  %v1301 = vmax.f32 %v1236, 0.0
  %v1302 = vmax.f32 %v1239, 0.0
  %v1303 = vmax.f32 %v1242, 0.0
  %v1304 = vmax.f32 %v1245, 0.0
  %v1305 = vmax.f32 %v1248, 0.0
  %v1306 = vmax.f32 %v1251, 0.0
  %v1307 = vmax.f32 %v1254, 0.0
  %v1308 = vmax.f32 %v1257, 0.0
  %v1309 = vmax.f32 %v1260, 0.0
  %v1310 = vmax.f32 %v1263, 0.0
  %v1311 = vmax.f32 %v1266, 0.0
  %v1312 = vmax.f32 %v1269, 0.0
  %v1313 = vmax.f32 %v1272, 0.0
  %v1314 = vmax.f32 %v1275, 0.0
  %v1315 = vmax.f32 %v1278, 0.0
  %v1316 = vmax.f32 %v1281, 0.0
  %v1317 = vmax.f32 %v1284, 0.0
  %1318 = vadd.xlane.f32.xlu0 %v1286
  %v1319 = vpop.xlane.xlu0 %1318
  %1320 = vadd.xlane.f32.xlu0 %v1287
  %v1321 = vpop.xlane.xlu0 %1320
  %1322 = vadd.xlane.f32.xlu0 %v1288
  %v1323 = vpop.xlane.xlu0 %1322
  %1324 = vadd.xlane.f32.xlu0 %v1289
  %v1325 = vpop.xlane.xlu0 %1324
  %1326 = vadd.xlane.f32.xlu0 %v1290
  %v1327 = vpop.xlane.xlu0 %1326
  %1328 = vadd.xlane.f32.xlu0 %v1291
  %v1329 = vpop.xlane.xlu0 %1328
  %1330 = vadd.xlane.f32.xlu0 %v1292
  %v1331 = vpop.xlane.xlu0 %1330
  %1332 = vadd.xlane.f32.xlu0 %v1293
  %v1333 = vpop.xlane.xlu0 %1332
  %1334 = vadd.xlane.f32.xlu0 %v1294
  %v1335 = vpop.xlane.xlu0 %1334
  %1336 = vadd.xlane.f32.xlu0 %v1295
  %v1337 = vpop.xlane.xlu0 %1336
  %1338 = vadd.xlane.f32.xlu0 %v1296
  %v1339 = vpop.xlane.xlu0 %1338
  %1340 = vadd.xlane.f32.xlu0 %v1297
  %v1341 = vpop.xlane.xlu0 %1340
  %1342 = vadd.xlane.f32.xlu0 %v1298
  %v1343 = vpop.xlane.xlu0 %1342
  %1344 = vadd.xlane.f32.xlu0 %v1299
  %v1345 = vpop.xlane.xlu0 %1344
  %1346 = vadd.xlane.f32.xlu0 %v1300
  %v1347 = vpop.xlane.xlu0 %1346
  %1348 = vadd.xlane.f32.xlu0 %v1301
  %v1349 = vpop.xlane.xlu0 %1348
  %1350 = vadd.xlane.f32.xlu0 %v1302
  %v1351 = vpop.xlane.xlu0 %1350
  %1352 = vadd.xlane.f32.xlu0 %v1303
  %v1353 = vpop.xlane.xlu0 %1352
  %1354 = vadd.xlane.f32.xlu0 %v1304
  %v1355 = vpop.xlane.xlu0 %1354
  %1356 = vadd.xlane.f32.xlu0 %v1305
  %v1357 = vpop.xlane.xlu0 %1356
  %1358 = vadd.xlane.f32.xlu0 %v1306
  %v1359 = vpop.xlane.xlu0 %1358
  %1360 = vadd.xlane.f32.xlu0 %v1307
  %v1361 = vpop.xlane.xlu0 %1360
  %1362 = vadd.xlane.f32.xlu0 %v1308
  %v1363 = vpop.xlane.xlu0 %1362
  %1364 = vadd.xlane.f32.xlu0 %v1309
  %v1365 = vpop.xlane.xlu0 %1364
  %1366 = vadd.xlane.f32.xlu0 %v1310
  %v1367 = vpop.xlane.xlu0 %1366
  %1368 = vadd.xlane.f32.xlu0 %v1311
  %v1369 = vpop.xlane.xlu0 %1368
  %1370 = vadd.xlane.f32.xlu0 %v1312
  %v1371 = vpop.xlane.xlu0 %1370
  %1372 = vadd.xlane.f32.xlu0 %v1313
  %v1373 = vpop.xlane.xlu0 %1372
  %1374 = vadd.xlane.f32.xlu0 %v1314
  %v1375 = vpop.xlane.xlu0 %1374
  %1376 = vadd.xlane.f32.xlu0 %v1315
  %v1377 = vpop.xlane.xlu0 %1376
  %1378 = vadd.xlane.f32.xlu0 %v1316
  %v1379 = vpop.xlane.xlu0 %1378
  %1380 = vadd.xlane.f32.xlu0 %v1317
  %v1381 = vpop.xlane.xlu0 %1380
  %v1382 = vmul.f32 %v1319, 0.03125
  %v1383 = vmul.f32 %v1321, 0.03125
  %v1384 = vmul.f32 %v1323, 0.03125
  %v1385 = vmul.f32 %v1325, 0.03125
  %v1386 = vmul.f32 %v1327, 0.03125
  %v1387 = vmul.f32 %v1329, 0.03125
  %v1388 = vmul.f32 %v1331, 0.03125
  %v1389 = vmul.f32 %v1333, 0.03125
  %v1390 = vmul.f32 %v1335, 0.03125
  %v1391 = vmul.f32 %v1337, 0.03125
  %v1392 = vmul.f32 %v1339, 0.03125
  %v1393 = vmul.f32 %v1341, 0.03125
  %v1394 = vmul.f32 %v1343, 0.03125
  %v1395 = vmul.f32 %v1345, 0.03125
  %v1396 = vmul.f32 %v1347, 0.03125
  %v1397 = vmul.f32 %v1349, 0.03125
  %v1398 = vmul.f32 %v1351, 0.03125
  %v1399 = vmul.f32 %v1353, 0.03125
  %v1400 = vmul.f32 %v1355, 0.03125
  %v1401 = vmul.f32 %v1357, 0.03125
  %v1402 = vmul.f32 %v1359, 0.03125
  %v1403 = vmul.f32 %v1361, 0.03125
  %v1404 = vmul.f32 %v1363, 0.03125
  %v1405 = vmul.f32 %v1365, 0.03125
  %v1406 = vmul.f32 %v1367, 0.03125
  %v1407 = vmul.f32 %v1369, 0.03125
  %v1408 = vmul.f32 %v1371, 0.03125
  %v1409 = vmul.f32 %v1373, 0.03125
  %v1410 = vmul.f32 %v1375, 0.03125
  %v1411 = vmul.f32 %v1377, 0.03125
  %v1412 = vmul.f32 %v1379, 0.03125
  %v1413 = vmul.f32 %v1381, 0.03125
  %v1414 = vsub.f32 %v1286, %v1382
  %v1415 = vsub.f32 %v1287, %v1383
  %v1416 = vsub.f32 %v1288, %v1384
  %v1417 = vsub.f32 %v1289, %v1385
  %v1418 = vsub.f32 %v1290, %v1386
  %v1419 = vsub.f32 %v1291, %v1387
  %v1420 = vsub.f32 %v1292, %v1388
  %v1421 = vsub.f32 %v1293, %v1389
  %v1422 = vsub.f32 %v1294, %v1390
  %v1423 = vsub.f32 %v1295, %v1391
  %v1424 = vsub.f32 %v1296, %v1392
  %v1425 = vsub.f32 %v1297, %v1393
  %v1426 = vsub.f32 %v1298, %v1394
  %v1427 = vsub.f32 %v1299, %v1395
  %v1428 = vsub.f32 %v1300, %v1396
  %v1429 = vsub.f32 %v1301, %v1397
  %v1430 = vsub.f32 %v1302, %v1398
  %v1431 = vsub.f32 %v1303, %v1399
  %v1432 = vsub.f32 %v1304, %v1400
  %v1433 = vsub.f32 %v1305, %v1401
  %v1434 = vsub.f32 %v1306, %v1402
  %v1435 = vsub.f32 %v1307, %v1403
  %v1436 = vsub.f32 %v1308, %v1404
  %v1437 = vsub.f32 %v1309, %v1405
  %v1438 = vsub.f32 %v1310, %v1406
  %v1439 = vsub.f32 %v1311, %v1407
  %v1440 = vsub.f32 %v1312, %v1408
  %v1441 = vsub.f32 %v1313, %v1409
  %v1442 = vsub.f32 %v1314, %v1410
  %v1443 = vsub.f32 %v1315, %v1411
  %v1444 = vsub.f32 %v1316, %v1412
  %v1445 = vsub.f32 %v1317, %v1413
  %v1446 = vmul.f32 %v1414, %v545
  %v1447 = vmul.f32 %v1415, %v545
  %v1448 = vmul.f32 %v1416, %v545
  %v1449 = vmul.f32 %v1417, %v545
  %v1450 = vmul.f32 %v1418, %v545
  %v1451 = vmul.f32 %v1419, %v545
  %v1452 = vmul.f32 %v1420, %v545
  %v1453 = vmul.f32 %v1421, %v545
  %v1454 = vmul.f32 %v1422, %v545
  %v1455 = vmul.f32 %v1423, %v545
  %v1456 = vmul.f32 %v1424, %v545
  %v1457 = vmul.f32 %v1425, %v545
  %v1458 = vmul.f32 %v1426, %v545
  %v1459 = vmul.f32 %v1427, %v545
  %v1460 = vmul.f32 %v1428, %v545
  %v1461 = vmul.f32 %v1429, %v545
  %v1462 = vmul.f32 %v1430, %v545
  %v1463 = vmul.f32 %v1431, %v545
  %v1464 = vmul.f32 %v1432, %v545
  %v1465 = vmul.f32 %v1433, %v545
  %v1466 = vmul.f32 %v1434, %v545
  %v1467 = vmul.f32 %v1435, %v545
  %v1468 = vmul.f32 %v1436, %v545
  %v1469 = vmul.f32 %v1437, %v545
  %v1470 = vmul.f32 %v1438, %v545
  %v1471 = vmul.f32 %v1439, %v545
  %v1472 = vmul.f32 %v1440, %v545
  %v1473 = vmul.f32 %v1441, %v545
  %v1474 = vmul.f32 %v1442, %v545
  %v1475 = vmul.f32 %v1443, %v545
  %v1476 = vmul.f32 %v1444, %v545
  %v1477 = vmul.f32 %v1445, %v545
  %v1478 = vmul.f32 %v1446, %v1446
  %v1479 = vmul.f32 %v1447, %v1447
  %v1480 = vmul.f32 %v1448, %v1448
  %v1481 = vmul.f32 %v1449, %v1449
  %v1482 = vmul.f32 %v1450, %v1450
  %v1483 = vmul.f32 %v1451, %v1451
  %v1484 = vmul.f32 %v1452, %v1452
  %v1485 = vmul.f32 %v1453, %v1453
  %v1486 = vmul.f32 %v1454, %v1454
  %v1487 = vmul.f32 %v1455, %v1455
  %v1488 = vmul.f32 %v1456, %v1456
  %v1489 = vmul.f32 %v1457, %v1457
  %v1490 = vmul.f32 %v1458, %v1458
  %v1491 = vmul.f32 %v1459, %v1459
  %v1492 = vmul.f32 %v1460, %v1460
  %v1493 = vmul.f32 %v1461, %v1461
  %v1494 = vmul.f32 %v1462, %v1462
  %v1495 = vmul.f32 %v1463, %v1463
  %v1496 = vmul.f32 %v1464, %v1464
  %v1497 = vmul.f32 %v1465, %v1465
  %v1498 = vmul.f32 %v1466, %v1466
  %v1499 = vmul.f32 %v1467, %v1467
  %v1500 = vmul.f32 %v1468, %v1468
  %v1501 = vmul.f32 %v1469, %v1469
  %v1502 = vmul.f32 %v1470, %v1470
  %v1503 = vmul.f32 %v1471, %v1471
  %v1504 = vmul.f32 %v1472, %v1472
  %v1505 = vmul.f32 %v1473, %v1473
  %v1506 = vmul.f32 %v1474, %v1474
  %v1507 = vmul.f32 %v1475, %v1475
  %v1508 = vmul.f32 %v1476, %v1476
  %v1509 = vmul.f32 %v1477, %v1477
  %1510 = vadd.xlane.f32.xlu0 %v1478
  %v1511 = vpop.xlane.xlu0 %1510
  %1512 = vadd.xlane.f32.xlu0 %v1479
  %v1513 = vpop.xlane.xlu0 %1512
  %1514 = vadd.xlane.f32.xlu0 %v1480
  %v1515 = vpop.xlane.xlu0 %1514
  %1516 = vadd.xlane.f32.xlu0 %v1481
  %v1517 = vpop.xlane.xlu0 %1516
  %1518 = vadd.xlane.f32.xlu0 %v1482
  %v1519 = vpop.xlane.xlu0 %1518
  %1520 = vadd.xlane.f32.xlu0 %v1483
  %v1521 = vpop.xlane.xlu0 %1520
  %1522 = vadd.xlane.f32.xlu0 %v1484
  %v1523 = vpop.xlane.xlu0 %1522
  %1524 = vadd.xlane.f32.xlu0 %v1485
  %v1525 = vpop.xlane.xlu0 %1524
  %1526 = vadd.xlane.f32.xlu0 %v1486
  %v1527 = vpop.xlane.xlu0 %1526
  %1528 = vadd.xlane.f32.xlu0 %v1487
  %v1529 = vpop.xlane.xlu0 %1528
  %1530 = vadd.xlane.f32.xlu0 %v1488
  %v1531 = vpop.xlane.xlu0 %1530
  %1532 = vadd.xlane.f32.xlu0 %v1489
  %v1533 = vpop.xlane.xlu0 %1532
  %1534 = vadd.xlane.f32.xlu0 %v1490
  %v1535 = vpop.xlane.xlu0 %1534
  %1536 = vadd.xlane.f32.xlu0 %v1491
  %v1537 = vpop.xlane.xlu0 %1536
  %1538 = vadd.xlane.f32.xlu0 %v1492
  %v1539 = vpop.xlane.xlu0 %1538
  %1540 = vadd.xlane.f32.xlu0 %v1493
  %v1541 = vpop.xlane.xlu0 %1540
  %1542 = vadd.xlane.f32.xlu0 %v1494
  %v1543 = vpop.xlane.xlu0 %1542
  %1544 = vadd.xlane.f32.xlu0 %v1495
  %v1545 = vpop.xlane.xlu0 %1544
  %1546 = vadd.xlane.f32.xlu0 %v1496
  %v1547 = vpop.xlane.xlu0 %1546
  %1548 = vadd.xlane.f32.xlu0 %v1497
  %v1549 = vpop.xlane.xlu0 %1548
  %1550 = vadd.xlane.f32.xlu0 %v1498
  %v1551 = vpop.xlane.xlu0 %1550
  %1552 = vadd.xlane.f32.xlu0 %v1499
  %v1553 = vpop.xlane.xlu0 %1552
  %1554 = vadd.xlane.f32.xlu0 %v1500
  %v1555 = vpop.xlane.xlu0 %1554
  %1556 = vadd.xlane.f32.xlu0 %v1501
  %v1557 = vpop.xlane.xlu0 %1556
  %1558 = vadd.xlane.f32.xlu0 %v1502
  %v1559 = vpop.xlane.xlu0 %1558
  %1560 = vadd.xlane.f32.xlu0 %v1503
  %v1561 = vpop.xlane.xlu0 %1560
  %1562 = vadd.xlane.f32.xlu0 %v1504
  %v1563 = vpop.xlane.xlu0 %1562
  %1564 = vadd.xlane.f32.xlu0 %v1505
  %v1565 = vpop.xlane.xlu0 %1564
  %1566 = vadd.xlane.f32.xlu0 %v1506
  %v1567 = vpop.xlane.xlu0 %1566
  %1568 = vadd.xlane.f32.xlu0 %v1507
  %v1569 = vpop.xlane.xlu0 %1568
  %1570 = vadd.xlane.f32.xlu0 %v1508
  %v1571 = vpop.xlane.xlu0 %1570
  %1572 = vadd.xlane.f32.xlu0 %v1509
  %v1573 = vpop.xlane.xlu0 %1572
  %v1574 = vmul.f32 %v1511, 0.03125
  %v1575 = vmul.f32 %v1513, 0.03125
  %v1576 = vmul.f32 %v1515, 0.03125
  %v1577 = vmul.f32 %v1517, 0.03125
  %v1578 = vmul.f32 %v1519, 0.03125
  %v1579 = vmul.f32 %v1521, 0.03125
  %v1580 = vmul.f32 %v1523, 0.03125
  %v1581 = vmul.f32 %v1525, 0.03125
  %v1582 = vmul.f32 %v1527, 0.03125
  %v1583 = vmul.f32 %v1529, 0.03125
  %v1584 = vmul.f32 %v1531, 0.03125
  %v1585 = vmul.f32 %v1533, 0.03125
  %v1586 = vmul.f32 %v1535, 0.03125
  %v1587 = vmul.f32 %v1537, 0.03125
  %v1588 = vmul.f32 %v1539, 0.03125
  %v1589 = vmul.f32 %v1541, 0.03125
  %v1590 = vmul.f32 %v1543, 0.03125
  %v1591 = vmul.f32 %v1545, 0.03125
  %v1592 = vmul.f32 %v1547, 0.03125
  %v1593 = vmul.f32 %v1549, 0.03125
  %v1594 = vmul.f32 %v1551, 0.03125
  %v1595 = vmul.f32 %v1553, 0.03125
  %v1596 = vmul.f32 %v1555, 0.03125
  %v1597 = vmul.f32 %v1557, 0.03125
  %v1598 = vmul.f32 %v1559, 0.03125
  %v1599 = vmul.f32 %v1561, 0.03125
  %v1600 = vmul.f32 %v1563, 0.03125
  %v1601 = vmul.f32 %v1565, 0.03125
  %v1602 = vmul.f32 %v1567, 0.03125
  %v1603 = vmul.f32 %v1569, 0.03125
  %v1604 = vmul.f32 %v1571, 0.03125
  %v1605 = vmul.f32 %v1573, 0.03125
  %v1606 = vadd.f32 %v1574, 1e-05
  %v1607 = vadd.f32 %v1575, 1e-05
  %v1608 = vadd.f32 %v1576, 1e-05
  %v1609 = vadd.f32 %v1577, 1e-05
  %v1610 = vadd.f32 %v1578, 1e-05
  %v1611 = vadd.f32 %v1579, 1e-05
  %v1612 = vadd.f32 %v1580, 1e-05
  %v1613 = vadd.f32 %v1581, 1e-05
  %v1614 = vadd.f32 %v1582, 1e-05
  %v1615 = vadd.f32 %v1583, 1e-05
  %v1616 = vadd.f32 %v1584, 1e-05
  %v1617 = vadd.f32 %v1585, 1e-05
  %v1618 = vadd.f32 %v1586, 1e-05
  %v1619 = vadd.f32 %v1587, 1e-05
  %v1620 = vadd.f32 %v1588, 1e-05
  %v1621 = vadd.f32 %v1589, 1e-05
  %v1622 = vadd.f32 %v1590, 1e-05
  %v1623 = vadd.f32 %v1591, 1e-05
  %v1624 = vadd.f32 %v1592, 1e-05
  %v1625 = vadd.f32 %v1593, 1e-05
  %v1626 = vadd.f32 %v1594, 1e-05
  %v1627 = vadd.f32 %v1595, 1e-05
  %v1628 = vadd.f32 %v1596, 1e-05
  %v1629 = vadd.f32 %v1597, 1e-05
  %v1630 = vadd.f32 %v1598, 1e-05
  %v1631 = vadd.f32 %v1599, 1e-05
  %v1632 = vadd.f32 %v1600, 1e-05
  %v1633 = vadd.f32 %v1601, 1e-05
  %v1634 = vadd.f32 %v1602, 1e-05
  %v1635 = vadd.f32 %v1603, 1e-05
  %v1636 = vadd.f32 %v1604, 1e-05
  %v1637 = vadd.f32 %v1605, 1e-05
  %v1638 = vrsqrt.pop %v1606
  %v1639 = vmul.f32 %v1638, %v1606
  %v1640 = vmul.f32 %v1639, %v1638
  %v1641 = vmul.f32 0.5, %v1640
  %v1642 = vsub.f32 1.5, %v1641
  %v1643 = vmul.f32 %v1638, %v1642
  %vm1644 = vweird.f32 %v1606
  %vm1645 = vweird.f32 %v1638
  %vm1646 = vmor %vm1644, %vm1645
  %v1647 = vsel %vm1646, %v1638, %v1643
  %v1648 = vrsqrt.pop %v1607
  %v1649 = vmul.f32 %v1648, %v1607
  %v1650 = vmul.f32 %v1649, %v1648
  %v1651 = vmul.f32 0.5, %v1650
  %v1652 = vsub.f32 1.5, %v1651
  %v1653 = vmul.f32 %v1648, %v1652
  %vm1654 = vweird.f32 %v1607
  %vm1655 = vweird.f32 %v1648
  %vm1656 = vmor %vm1654, %vm1655
  %v1657 = vsel %vm1656, %v1648, %v1653
  %v1658 = vrsqrt.pop %v1608
  %v1659 = vmul.f32 %v1658, %v1608
  %v1660 = vmul.f32 %v1659, %v1658
  %v1661 = vmul.f32 0.5, %v1660
  %v1662 = vsub.f32 1.5, %v1661
  %v1663 = vmul.f32 %v1658, %v1662
  %vm1664 = vweird.f32 %v1608
  %vm1665 = vweird.f32 %v1658
  %vm1666 = vmor %vm1664, %vm1665
  %v1667 = vsel %vm1666, %v1658, %v1663
  %v1668 = vrsqrt.pop %v1609
  %v1669 = vmul.f32 %v1668, %v1609
  %v1670 = vmul.f32 %v1669, %v1668
  %v1671 = vmul.f32 0.5, %v1670
  %v1672 = vsub.f32 1.5, %v1671
  %v1673 = vmul.f32 %v1668, %v1672
  %vm1674 = vweird.f32 %v1609
  %vm1675 = vweird.f32 %v1668
  %vm1676 = vmor %vm1674, %vm1675
  %v1677 = vsel %vm1676, %v1668, %v1673
  %v1678 = vrsqrt.pop %v1610
  %v1679 = vmul.f32 %v1678, %v1610
  %v1680 = vmul.f32 %v1679, %v1678
  %v1681 = vmul.f32 0.5, %v1680
  %v1682 = vsub.f32 1.5, %v1681
  %v1683 = vmul.f32 %v1678, %v1682
  %vm1684 = vweird.f32 %v1610
  %vm1685 = vweird.f32 %v1678
  %vm1686 = vmor %vm1684, %vm1685
  %v1687 = vsel %vm1686, %v1678, %v1683
  %v1688 = vrsqrt.pop %v1611
  %v1689 = vmul.f32 %v1688, %v1611
  %v1690 = vmul.f32 %v1689, %v1688
  %v1691 = vmul.f32 0.5, %v1690
  %v1692 = vsub.f32 1.5, %v1691
  %v1693 = vmul.f32 %v1688, %v1692
  %vm1694 = vweird.f32 %v1611
  %vm1695 = vweird.f32 %v1688
  %vm1696 = vmor %vm1694, %vm1695
  %v1697 = vsel %vm1696, %v1688, %v1693
  %v1698 = vrsqrt.pop %v1612
  %v1699 = vmul.f32 %v1698, %v1612
  %v1700 = vmul.f32 %v1699, %v1698
  %v1701 = vmul.f32 0.5, %v1700
  %v1702 = vsub.f32 1.5, %v1701
  %v1703 = vmul.f32 %v1698, %v1702
  %vm1704 = vweird.f32 %v1612
  %vm1705 = vweird.f32 %v1698
  %vm1706 = vmor %vm1704, %vm1705
  %v1707 = vsel %vm1706, %v1698, %v1703
  %v1708 = vrsqrt.pop %v1613
  %v1709 = vmul.f32 %v1708, %v1613
  %v1710 = vmul.f32 %v1709, %v1708
  %v1711 = vmul.f32 0.5, %v1710
  %v1712 = vsub.f32 1.5, %v1711
  %v1713 = vmul.f32 %v1708, %v1712
  %vm1714 = vweird.f32 %v1613
  %vm1715 = vweird.f32 %v1708
  %vm1716 = vmor %vm1714, %vm1715
  %v1717 = vsel %vm1716, %v1708, %v1713
  %v1718 = vrsqrt.pop %v1614
  %v1719 = vmul.f32 %v1718, %v1614
  %v1720 = vmul.f32 %v1719, %v1718
  %v1721 = vmul.f32 0.5, %v1720
  %v1722 = vsub.f32 1.5, %v1721
  %v1723 = vmul.f32 %v1718, %v1722
  %vm1724 = vweird.f32 %v1614
  %vm1725 = vweird.f32 %v1718
  %vm1726 = vmor %vm1724, %vm1725
  %v1727 = vsel %vm1726, %v1718, %v1723
  %v1728 = vrsqrt.pop %v1615
  %v1729 = vmul.f32 %v1728, %v1615
  %v1730 = vmul.f32 %v1729, %v1728
  %v1731 = vmul.f32 0.5, %v1730
  %v1732 = vsub.f32 1.5, %v1731
  %v1733 = vmul.f32 %v1728, %v1732
  %vm1734 = vweird.f32 %v1615
  %vm1735 = vweird.f32 %v1728
  %vm1736 = vmor %vm1734, %vm1735
  %v1737 = vsel %vm1736, %v1728, %v1733
  %v1738 = vrsqrt.pop %v1616
  %v1739 = vmul.f32 %v1738, %v1616
  %v1740 = vmul.f32 %v1739, %v1738
  %v1741 = vmul.f32 0.5, %v1740
  %v1742 = vsub.f32 1.5, %v1741
  %v1743 = vmul.f32 %v1738, %v1742
  %vm1744 = vweird.f32 %v1616
  %vm1745 = vweird.f32 %v1738
  %vm1746 = vmor %vm1744, %vm1745
  %v1747 = vsel %vm1746, %v1738, %v1743
  %v1748 = vrsqrt.pop %v1617
  %v1749 = vmul.f32 %v1748, %v1617
  %v1750 = vmul.f32 %v1749, %v1748
  %v1751 = vmul.f32 0.5, %v1750
  %v1752 = vsub.f32 1.5, %v1751
  %v1753 = vmul.f32 %v1748, %v1752
  %vm1754 = vweird.f32 %v1617
  %vm1755 = vweird.f32 %v1748
  %vm1756 = vmor %vm1754, %vm1755
  %v1757 = vsel %vm1756, %v1748, %v1753
  %v1758 = vrsqrt.pop %v1618
  %v1759 = vmul.f32 %v1758, %v1618
  %v1760 = vmul.f32 %v1759, %v1758
  %v1761 = vmul.f32 0.5, %v1760
  %v1762 = vsub.f32 1.5, %v1761
  %v1763 = vmul.f32 %v1758, %v1762
  %vm1764 = vweird.f32 %v1618
  %vm1765 = vweird.f32 %v1758
  %vm1766 = vmor %vm1764, %vm1765
  %v1767 = vsel %vm1766, %v1758, %v1763
  %v1768 = vrsqrt.pop %v1619
  %v1769 = vmul.f32 %v1768, %v1619
  %v1770 = vmul.f32 %v1769, %v1768
  %v1771 = vmul.f32 0.5, %v1770
  %v1772 = vsub.f32 1.5, %v1771
  %v1773 = vmul.f32 %v1768, %v1772
  %vm1774 = vweird.f32 %v1619
  %vm1775 = vweird.f32 %v1768
  %vm1776 = vmor %vm1774, %vm1775
  %v1777 = vsel %vm1776, %v1768, %v1773
  %v1778 = vrsqrt.pop %v1620
  %v1779 = vmul.f32 %v1778, %v1620
  %v1780 = vmul.f32 %v1779, %v1778
  %v1781 = vmul.f32 0.5, %v1780
  %v1782 = vsub.f32 1.5, %v1781
  %v1783 = vmul.f32 %v1778, %v1782
  %vm1784 = vweird.f32 %v1620
  %vm1785 = vweird.f32 %v1778
  %vm1786 = vmor %vm1784, %vm1785
  %v1787 = vsel %vm1786, %v1778, %v1783
  %v1788 = vrsqrt.pop %v1621
  %v1789 = vmul.f32 %v1788, %v1621
  %v1790 = vmul.f32 %v1789, %v1788
  %v1791 = vmul.f32 0.5, %v1790
  %v1792 = vsub.f32 1.5, %v1791
  %v1793 = vmul.f32 %v1788, %v1792
  %vm1794 = vweird.f32 %v1621
  %vm1795 = vweird.f32 %v1788
  %vm1796 = vmor %vm1794, %vm1795
  %v1797 = vsel %vm1796, %v1788, %v1793
  %v1798 = vrsqrt.pop %v1622
  %v1799 = vmul.f32 %v1798, %v1622
  %v1800 = vmul.f32 %v1799, %v1798
  %v1801 = vmul.f32 0.5, %v1800
  %v1802 = vsub.f32 1.5, %v1801
  %v1803 = vmul.f32 %v1798, %v1802
  %vm1804 = vweird.f32 %v1622
  %vm1805 = vweird.f32 %v1798
  %vm1806 = vmor %vm1804, %vm1805
  %v1807 = vsel %vm1806, %v1798, %v1803
  %v1808 = vrsqrt.pop %v1623
  %v1809 = vmul.f32 %v1808, %v1623
  %v1810 = vmul.f32 %v1809, %v1808
  %v1811 = vmul.f32 0.5, %v1810
  %v1812 = vsub.f32 1.5, %v1811
  %v1813 = vmul.f32 %v1808, %v1812
  %vm1814 = vweird.f32 %v1623
  %vm1815 = vweird.f32 %v1808
  %vm1816 = vmor %vm1814, %vm1815
  %v1817 = vsel %vm1816, %v1808, %v1813
  %v1818 = vrsqrt.pop %v1624
  %v1819 = vmul.f32 %v1818, %v1624
  %v1820 = vmul.f32 %v1819, %v1818
  %v1821 = vmul.f32 0.5, %v1820
  %v1822 = vsub.f32 1.5, %v1821
  %v1823 = vmul.f32 %v1818, %v1822
  %vm1824 = vweird.f32 %v1624
  %vm1825 = vweird.f32 %v1818
  %vm1826 = vmor %vm1824, %vm1825
  %v1827 = vsel %vm1826, %v1818, %v1823
  %v1828 = vrsqrt.pop %v1625
  %v1829 = vmul.f32 %v1828, %v1625
  %v1830 = vmul.f32 %v1829, %v1828
  %v1831 = vmul.f32 0.5, %v1830
  %v1832 = vsub.f32 1.5, %v1831
  %v1833 = vmul.f32 %v1828, %v1832
  %vm1834 = vweird.f32 %v1625
  %vm1835 = vweird.f32 %v1828
  %vm1836 = vmor %vm1834, %vm1835
  %v1837 = vsel %vm1836, %v1828, %v1833
  %v1838 = vrsqrt.pop %v1626
  %v1839 = vmul.f32 %v1838, %v1626
  %v1840 = vmul.f32 %v1839, %v1838
  %v1841 = vmul.f32 0.5, %v1840
  %v1842 = vsub.f32 1.5, %v1841
  %v1843 = vmul.f32 %v1838, %v1842
  %vm1844 = vweird.f32 %v1626
  %vm1845 = vweird.f32 %v1838
  %vm1846 = vmor %vm1844, %vm1845
  %v1847 = vsel %vm1846, %v1838, %v1843
  %v1848 = vrsqrt.pop %v1627
  %v1849 = vmul.f32 %v1848, %v1627
  %v1850 = vmul.f32 %v1849, %v1848
  %v1851 = vmul.f32 0.5, %v1850
  %v1852 = vsub.f32 1.5, %v1851
  %v1853 = vmul.f32 %v1848, %v1852
  %vm1854 = vweird.f32 %v1627
  %vm1855 = vweird.f32 %v1848
  %vm1856 = vmor %vm1854, %vm1855
  %v1857 = vsel %vm1856, %v1848, %v1853
  %v1858 = vrsqrt.pop %v1628
  %v1859 = vmul.f32 %v1858, %v1628
  %v1860 = vmul.f32 %v1859, %v1858
  %v1861 = vmul.f32 0.5, %v1860
  %v1862 = vsub.f32 1.5, %v1861
  %v1863 = vmul.f32 %v1858, %v1862
  %vm1864 = vweird.f32 %v1628
  %vm1865 = vweird.f32 %v1858
  %vm1866 = vmor %vm1864, %vm1865
  %v1867 = vsel %vm1866, %v1858, %v1863
  %v1868 = vrsqrt.pop %v1629
  %v1869 = vmul.f32 %v1868, %v1629
  %v1870 = vmul.f32 %v1869, %v1868
  %v1871 = vmul.f32 0.5, %v1870
  %v1872 = vsub.f32 1.5, %v1871
  %v1873 = vmul.f32 %v1868, %v1872
  %vm1874 = vweird.f32 %v1629
  %vm1875 = vweird.f32 %v1868
  %vm1876 = vmor %vm1874, %vm1875
  %v1877 = vsel %vm1876, %v1868, %v1873
  %v1878 = vrsqrt.pop %v1630
  %v1879 = vmul.f32 %v1878, %v1630
  %v1880 = vmul.f32 %v1879, %v1878
  %v1881 = vmul.f32 0.5, %v1880
  %v1882 = vsub.f32 1.5, %v1881
  %v1883 = vmul.f32 %v1878, %v1882
  %vm1884 = vweird.f32 %v1630
  %vm1885 = vweird.f32 %v1878
  %vm1886 = vmor %vm1884, %vm1885
  %v1887 = vsel %vm1886, %v1878, %v1883
  %v1888 = vrsqrt.pop %v1631
  %v1889 = vmul.f32 %v1888, %v1631
  %v1890 = vmul.f32 %v1889, %v1888
  %v1891 = vmul.f32 0.5, %v1890
  %v1892 = vsub.f32 1.5, %v1891
  %v1893 = vmul.f32 %v1888, %v1892
  %vm1894 = vweird.f32 %v1631
  %vm1895 = vweird.f32 %v1888
  %vm1896 = vmor %vm1894, %vm1895
  %v1897 = vsel %vm1896, %v1888, %v1893
  %v1898 = vrsqrt.pop %v1632
  %v1899 = vmul.f32 %v1898, %v1632
  %v1900 = vmul.f32 %v1899, %v1898
  %v1901 = vmul.f32 0.5, %v1900
  %v1902 = vsub.f32 1.5, %v1901
  %v1903 = vmul.f32 %v1898, %v1902
  %vm1904 = vweird.f32 %v1632
  %vm1905 = vweird.f32 %v1898
  %vm1906 = vmor %vm1904, %vm1905
  %v1907 = vsel %vm1906, %v1898, %v1903
  %v1908 = vrsqrt.pop %v1633
  %v1909 = vmul.f32 %v1908, %v1633
  %v1910 = vmul.f32 %v1909, %v1908
  %v1911 = vmul.f32 0.5, %v1910
  %v1912 = vsub.f32 1.5, %v1911
  %v1913 = vmul.f32 %v1908, %v1912
  %vm1914 = vweird.f32 %v1633
  %vm1915 = vweird.f32 %v1908
  %vm1916 = vmor %vm1914, %vm1915
  %v1917 = vsel %vm1916, %v1908, %v1913
  %v1918 = vrsqrt.pop %v1634
  %v1919 = vmul.f32 %v1918, %v1634
  %v1920 = vmul.f32 %v1919, %v1918
  %v1921 = vmul.f32 0.5, %v1920
  %v1922 = vsub.f32 1.5, %v1921
  %v1923 = vmul.f32 %v1918, %v1922
  %vm1924 = vweird.f32 %v1634
  %vm1925 = vweird.f32 %v1918
  %vm1926 = vmor %vm1924, %vm1925
  %v1927 = vsel %vm1926, %v1918, %v1923
  %v1928 = vrsqrt.pop %v1635
  %v1929 = vmul.f32 %v1928, %v1635
  %v1930 = vmul.f32 %v1929, %v1928
  %v1931 = vmul.f32 0.5, %v1930
  %v1932 = vsub.f32 1.5, %v1931
  %v1933 = vmul.f32 %v1928, %v1932
  %vm1934 = vweird.f32 %v1635
  %vm1935 = vweird.f32 %v1928
  %vm1936 = vmor %vm1934, %vm1935
  %v1937 = vsel %vm1936, %v1928, %v1933
  %v1938 = vrsqrt.pop %v1636
  %v1939 = vmul.f32 %v1938, %v1636
  %v1940 = vmul.f32 %v1939, %v1938
  %v1941 = vmul.f32 0.5, %v1940
  %v1942 = vsub.f32 1.5, %v1941
  %v1943 = vmul.f32 %v1938, %v1942
  %vm1944 = vweird.f32 %v1636
  %vm1945 = vweird.f32 %v1938
  %vm1946 = vmor %vm1944, %vm1945
  %v1947 = vsel %vm1946, %v1938, %v1943
  %v1948 = vrsqrt.pop %v1637
  %v1949 = vmul.f32 %v1948, %v1637
  %v1950 = vmul.f32 %v1949, %v1948
  %v1951 = vmul.f32 0.5, %v1950
  %v1952 = vsub.f32 1.5, %v1951
  %v1953 = vmul.f32 %v1948, %v1952
  %vm1954 = vweird.f32 %v1637
  %vm1955 = vweird.f32 %v1948
  %vm1956 = vmor %vm1954, %vm1955
  %v1957 = vsel %vm1956, %v1948, %v1953
  %v1958 = vmul.f32 %v1446, %v1647
  %v1959 = vmul.f32 %v1447, %v1657
  %v1960 = vmul.f32 %v1448, %v1667
  %v1961 = vmul.f32 %v1449, %v1677
  %v1962 = vmul.f32 %v1450, %v1687
  %v1963 = vmul.f32 %v1451, %v1697
  %v1964 = vmul.f32 %v1452, %v1707
  %v1965 = vmul.f32 %v1453, %v1717
  %v1966 = vmul.f32 %v1454, %v1727
  %v1967 = vmul.f32 %v1455, %v1737
  %v1968 = vmul.f32 %v1456, %v1747
  %v1969 = vmul.f32 %v1457, %v1757
  %v1970 = vmul.f32 %v1458, %v1767
  %v1971 = vmul.f32 %v1459, %v1777
  %v1972 = vmul.f32 %v1460, %v1787
  %v1973 = vmul.f32 %v1461, %v1797
  %v1974 = vmul.f32 %v1462, %v1807
  %v1975 = vmul.f32 %v1463, %v1817
  %v1976 = vmul.f32 %v1464, %v1827
  %v1977 = vmul.f32 %v1465, %v1837
  %v1978 = vmul.f32 %v1466, %v1847
  %v1979 = vmul.f32 %v1467, %v1857
  %v1980 = vmul.f32 %v1468, %v1867
  %v1981 = vmul.f32 %v1469, %v1877
  %v1982 = vmul.f32 %v1470, %v1887
  %v1983 = vmul.f32 %v1471, %v1897
  %v1984 = vmul.f32 %v1472, %v1907
  %v1985 = vmul.f32 %v1473, %v1917
  %v1986 = vmul.f32 %v1474, %v1927
  %v1987 = vmul.f32 %v1475, %v1937
  %v1988 = vmul.f32 %v1476, %v1947
  %v1989 = vmul.f32 %v1477, %v1957
  %v1990 = vperm.slane %v27, 0
  %v1991 = vmul.f32 %v1958, %v1990
  %v1992 = vmul.f32 %v1959, %v1990
  %v1993 = vmul.f32 %v1960, %v1990
  %v1994 = vmul.f32 %v1961, %v1990
  %v1995 = vmul.f32 %v1962, %v1990
  %v1996 = vmul.f32 %v1963, %v1990
  %v1997 = vmul.f32 %v1964, %v1990
  %v1998 = vmul.f32 %v1965, %v1990
  %v1999 = vmul.f32 %v1966, %v1990
  %v2000 = vmul.f32 %v1967, %v1990
  %v2001 = vmul.f32 %v1968, %v1990
  %v2002 = vmul.f32 %v1969, %v1990
  %v2003 = vmul.f32 %v1970, %v1990
  %v2004 = vmul.f32 %v1971, %v1990
  %v2005 = vmul.f32 %v1972, %v1990
  %v2006 = vmul.f32 %v1973, %v1990
  %v2007 = vmul.f32 %v1974, %v1990
  %v2008 = vmul.f32 %v1975, %v1990
  %v2009 = vmul.f32 %v1976, %v1990
  %v2010 = vmul.f32 %v1977, %v1990
  %v2011 = vmul.f32 %v1978, %v1990
  %v2012 = vmul.f32 %v1979, %v1990
  %v2013 = vmul.f32 %v1980, %v1990
  %v2014 = vmul.f32 %v1981, %v1990
  %v2015 = vmul.f32 %v1982, %v1990
  %v2016 = vmul.f32 %v1983, %v1990
  %v2017 = vmul.f32 %v1984, %v1990
  %v2018 = vmul.f32 %v1985, %v1990
  %v2019 = vmul.f32 %v1986, %v1990
  %v2020 = vmul.f32 %v1987, %v1990
  %v2021 = vmul.f32 %v1988, %v1990
  %v2022 = vmul.f32 %v1989, %v1990
  %v2023 = vperm.slane %v28, 0
  %v2024 = vadd.f32 %v1991, %v2023
  %v2025 = vadd.f32 %v1992, %v2023
  %v2026 = vadd.f32 %v1993, %v2023
  %v2027 = vadd.f32 %v1994, %v2023
  %v2028 = vadd.f32 %v1995, %v2023
  %v2029 = vadd.f32 %v1996, %v2023
  %v2030 = vadd.f32 %v1997, %v2023
  %v2031 = vadd.f32 %v1998, %v2023
  %v2032 = vadd.f32 %v1999, %v2023
  %v2033 = vadd.f32 %v2000, %v2023
  %v2034 = vadd.f32 %v2001, %v2023
  %v2035 = vadd.f32 %v2002, %v2023
  %v2036 = vadd.f32 %v2003, %v2023
  %v2037 = vadd.f32 %v2004, %v2023
  %v2038 = vadd.f32 %v2005, %v2023
  %v2039 = vadd.f32 %v2006, %v2023
  %v2040 = vadd.f32 %v2007, %v2023
  %v2041 = vadd.f32 %v2008, %v2023
  %v2042 = vadd.f32 %v2009, %v2023
  %v2043 = vadd.f32 %v2010, %v2023
  %v2044 = vadd.f32 %v2011, %v2023
  %v2045 = vadd.f32 %v2012, %v2023
  %v2046 = vadd.f32 %v2013, %v2023
  %v2047 = vadd.f32 %v2014, %v2023
  %v2048 = vadd.f32 %v2015, %v2023
  %v2049 = vadd.f32 %v2016, %v2023
  %v2050 = vadd.f32 %v2017, %v2023
  %v2051 = vadd.f32 %v2018, %v2023
  %v2052 = vadd.f32 %v2019, %v2023
  %v2053 = vadd.f32 %v2020, %v2023
  %v2054 = vadd.f32 %v2021, %v2023
  %v2055 = vadd.f32 %v2022, %v2023
  %2056 = vst [vmem:[%s6] sm:$0xff] %v2024
  %2057 = vst [vmem:[%s6 + $0x8] sm:$0xff] %v2025
  %2058 = vst [vmem:[%s6 + $0x10] sm:$0xff] %v2026
  %2059 = vst [vmem:[%s6 + $0x18] sm:$0xff] %v2027
  %2060 = vst [vmem:[%s6 + $0x20] sm:$0xff] %v2028
  %2061 = vst [vmem:[%s6 + $0x28] sm:$0xff] %v2029
  %2062 = vst [vmem:[%s6 + $0x30] sm:$0xff] %v2030
  %2063 = vst [vmem:[%s6 + $0x38] sm:$0xff] %v2031
  %2064 = vst [vmem:[%s6 + $0x40] sm:$0xff] %v2032
  %2065 = vst [vmem:[%s6 + $0x48] sm:$0xff] %v2033
  %2066 = vst [vmem:[%s6 + $0x50] sm:$0xff] %v2034
  %2067 = vst [vmem:[%s6 + $0x58] sm:$0xff] %v2035
  %2068 = vst [vmem:[%s6 + $0x60] sm:$0xff] %v2036
  %2069 = vst [vmem:[%s6 + $0x68] sm:$0xff] %v2037
  %2070 = vst [vmem:[%s6 + $0x70] sm:$0xff] %v2038
  %2071 = vst [vmem:[%s6 + $0x78] sm:$0xff] %v2039
  %2072 = vst [vmem:[%s6 + $0x80] sm:$0xff] %v2040
  %2073 = vst [vmem:[%s6 + $0x88] sm:$0xff] %v2041
  %2074 = vst [vmem:[%s6 + $0x90] sm:$0xff] %v2042
  %2075 = vst [vmem:[%s6 + $0x98] sm:$0xff] %v2043
  %2076 = vst [vmem:[%s6 + $0xa0] sm:$0xff] %v2044
  %2077 = vst [vmem:[%s6 + $0xa8] sm:$0xff] %v2045
  %2078 = vst [vmem:[%s6 + $0xb0] sm:$0xff] %v2046
  %2079 = vst [vmem:[%s6 + $0xb8] sm:$0xff] %v2047
  %2080 = vst [vmem:[%s6 + $0xc0] sm:$0xff] %v2048
  %2081 = vst [vmem:[%s6 + $0xc8] sm:$0xff] %v2049
  %2082 = vst [vmem:[%s6 + $0xd0] sm:$0xff] %v2050
  %2083 = vst [vmem:[%s6 + $0xd8] sm:$0xff] %v2051
  %2084 = vst [vmem:[%s6 + $0xe0] sm:$0xff] %v2052
  %2085 = vst [vmem:[%s6 + $0xe8] sm:$0xff] %v2053
  %2086 = vst [vmem:[%s6 + $0xf0] sm:$0xff] %v2054
  %2087 = vst [vmem:[%s6 + $0xf8] sm:$0xff] %v2055
  // Predicated region
  $region26: #{aggregate_module.1} parent=0 // pred_check
    _
  $region27: #{aggregate_module.1} parent=0 // pred_check_branch
    %2089 = sbr.rel (0) target = $region29
  $region28: #{aggregate_module.1} parent=0 // pred_region
    _
  $region29: #{aggregate_module.1} parent=0 // pred_fallthru
    _
  // Predicated region
  $region30: #{aggregate_module.1} parent=0 // pred_check
    _
  $region31: #{aggregate_module.1} parent=0 // pred_check_branch
    %2091 = sbr.rel (0) target = $region33
  $region32: #{aggregate_module.1} parent=0 // pred_region
    _
  $region33: #{aggregate_module.1} parent=0 // pred_fallthru
    _

</llo_original>
